<compile_context>
chip_gen: v7x
topology: tpu7x:2x2x1
jax: 0.10.0
libtpu: 0.0.40
codegen_flags: <defaults>
</compile_context>

<pallas_src>
import functools
import numpy as np

import jax
import jax.numpy as jnp
from jax.experimental import pallas as pl
from jax.experimental.pallas import tpu as pltpu

BN_EPS = 1e-3


def _round_up(x, m):
    return ((x + m - 1) // m) * m


def _compute_vmem_limit():
    # Generation-aware VMEM budget (v5e/v6e 128 MiB physical, v7x 64 MiB).
    try:
        cap = int(pltpu.get_tpu_info().vmem_capacity_bytes)
    except Exception:
        cap = 64 * 1024 * 1024
    return int(min(cap * 3 // 4, 96 * 1024 * 1024))


_VMEM_LIMIT = _compute_vmem_limit()
_TM_PREF = 256            # flattened H*W rows per matmul tile
_TN_PREF = 256            # output channels per matmul tile
_MIN_ROWS_PALLAS = 128    # below this (per image) a 1x1 conv goes to jnp.dot
_DW_BLOCK_BUDGET = 6 * 1024 * 1024   # target bytes per dwconv input slab


# ----------------------------------------------------------------------------
# Activations (single EUP op per sigmoid: sigmoid(y) = 0.5*tanh(0.5*y)+0.5)
# ----------------------------------------------------------------------------
def _apply_act(y, act):
    if act == "relu":
        return jnp.maximum(y, 0.0)
    if act == "sigmoid":
        return 0.5 * jnp.tanh(0.5 * y) + 0.5
    if act == "swish":
        return y * (0.5 * jnp.tanh(0.5 * y) + 0.5)
    return y


# ----------------------------------------------------------------------------
# Pallas 1x1 conv (matmul) kernel: full-K resident, fused bias/act/gate/residual
# ----------------------------------------------------------------------------
def _conv1x1_kernel(*refs, act, has_gate, has_res):
    x_ref, w_ref, b_ref = refs[0], refs[1], refs[2]
    idx = 3
    g_ref = None
    r_ref = None
    if has_gate:
        g_ref = refs[idx]
        idx += 1
    if has_res:
        r_ref = refs[idx]
        idx += 1
    o_ref = refs[idx]

    a = x_ref[0]                                      # (tm, Kp) bf16
    if has_gate:
        a = a * g_ref[0].astype(a.dtype)              # per-K-channel SE gate
    y = jnp.dot(a, w_ref[...], preferred_element_type=jnp.float32)
    y = y + b_ref[0]                                  # folded BN bias
    y = _apply_act(y, act)
    if has_res:
        y = y + r_ref[0].astype(jnp.float32)          # fused residual add
    o_ref[0] = y.astype(o_ref.dtype)


def pallas_conv1x1(x, w, bias, act="none", gate=None, residual=None,
                   out_dtype=jnp.bfloat16):
    """x:(N,HW,K) @ w:(K,Cout) + bias, fused act / SE gate / residual.

    Full K kept VMEM-resident (no K grid axis, no accumulator scratch);
    bf16 inputs, f32 accumulation; M/N padded to lane-dense tile multiples.
    """
    N, HW, K = x.shape
    Cout = w.shape[1]

    tm = min(_TM_PREF, _round_up(HW, 8))
    tn = min(_TN_PREF, _round_up(Cout, 128))
    Kp = _round_up(K, 128)
    HWp = _round_up(HW, tm)
    Np = _round_up(Cout, tn)

    x = x.astype(jnp.bfloat16)
    w = w.astype(jnp.bfloat16)
    if (HWp, Kp) != (HW, K):
        x = jnp.pad(x, ((0, 0), (0, HWp - HW), (0, Kp - K)))
    if (Kp, Np) != (K, Cout):
        w = jnp.pad(w, ((0, Kp - K), (0, Np - Cout)))
    bias_p = jnp.pad(bias.astype(jnp.float32), (0, Np - Cout)).reshape(1, Np)

    has_gate = gate is not None
    has_res = residual is not None

    inputs = [x, w, bias_p]
    in_specs = [
        pl.BlockSpec((1, tm, Kp), lambda n, i, j: (n, i, 0)),
        pl.BlockSpec((Kp, tn), lambda n, i, j: (0, j)),
        pl.BlockSpec((1, tn), lambda n, i, j: (0, j)),
    ]
    if has_gate:
        g = gate.astype(jnp.float32)
        if Kp != K:
            g = jnp.pad(g, ((0, 0), (0, Kp - K)))
        inputs.append(g.reshape(N, 1, Kp))
        in_specs.append(pl.BlockSpec((1, 1, Kp), lambda n, i, j: (n, 0, 0)))
    if has_res:
        r = residual.astype(jnp.bfloat16)
        if (HWp, Np) != (HW, Cout):
            r = jnp.pad(r, ((0, 0), (0, HWp - HW), (0, Np - Cout)))
        inputs.append(r)
        in_specs.append(pl.BlockSpec((1, tm, tn), lambda n, i, j: (n, i, j)))

    kernel = functools.partial(_conv1x1_kernel, act=act,
                               has_gate=has_gate, has_res=has_res)
    out = pl.pallas_call(
        kernel,
        out_shape=jax.ShapeDtypeStruct((N, HWp, Np), out_dtype),
        grid=(N, HWp // tm, Np // tn),
        in_specs=in_specs,
        out_specs=pl.BlockSpec((1, tm, tn), lambda n, i, j: (n, i, j)),
        compiler_params=pltpu.CompilerParams(
            dimension_semantics=("parallel", "parallel", "parallel"),
            vmem_limit_bytes=_VMEM_LIMIT),
    )(*inputs)
    if (HWp, Np) != (HW, Cout):
        out = out[:, :HW, :Cout]
    return out


def _conv1x1_jnp(x, w, bias, act, gate=None, residual=None):
    # Latency-bound tiny shapes: plain XLA dot (per review).
    a = x.astype(jnp.float32)
    if gate is not None:
        a = a * gate.astype(jnp.float32)[:, None, :]
    y = jnp.einsum("nmk,kc->nmc", a, w.astype(jnp.float32))
    y = y + bias.astype(jnp.float32)
    y = _apply_act(y, act)
    if residual is not None:
        y = y + residual.astype(jnp.float32)
    return y.astype(jnp.bfloat16)


def conv1x1(x, w, b, act="none", gate=None, residual=None):
    """1x1 conv on NHWC input.  w: (1,1,Cin,Cout) (BN scale folded), b: (Cout,).
    gate: optional (N, Cin) SE channel gate.  residual: optional NHWC tensor
    with Cout channels added after the conv (fused into the kernel epilogue)."""
    N, H, W, Cin = x.shape
    Cout = w.shape[-1]
    w2 = w.reshape(-1, Cout)
    xf = x.reshape(N, H * W, Cin)
    res = residual.reshape(N, H * W, Cout) if residual is not None else None
    if H * W < _MIN_ROWS_PALLAS:
        out = _conv1x1_jnp(xf, w2, b, act, gate, res)
    else:
        out = pallas_conv1x1(xf, w2, b, act, gate, res)
    return out.reshape(N, H, W, Cout)


# ----------------------------------------------------------------------------
# Pallas depthwise conv: phase-decomposed, all taps per grid step, fused epilogue
# ----------------------------------------------------------------------------
def _dwconv_kernel(x_ref, w_ref, b_ref, o_ref, *, taps, act):
    # x_ref: (P, Hq, Wq, ct) phase slabs of one image, one channel tile.
    # taps:  static tuple of (phase, row-offset, col-offset) per kernel tap.
    _, Ho, Wo, ct = o_ref.shape
    acc = jnp.zeros((Ho, Wo, ct), jnp.float32)
    for ti, (p, qh, qw) in enumerate(taps):
        xs = x_ref[p, qh:qh + Ho, qw:qw + Wo, :]
        acc = acc + xs.astype(jnp.float32) * w_ref[ti]
    y = acc + b_ref[0]
    y = _apply_act(y, act)
    o_ref[0] = y.astype(o_ref.dtype)


def _pick_channel_tile(P, Hq, Wq, Cp):
    # Largest channel tile (multiple of 128 dividing Cp) whose input slab fits
    # the per-block budget.  TODO(synk): add halo-row tiling for very large
    # resolutions where even a 128-channel full-image slab exceeds the budget.
    m = Cp // 128
    best = 1
    for d in range(1, m + 1):
        if m % d == 0 and P * Hq * Wq * (d * 128) * 2 <= _DW_BLOCK_BUDGET:
            best = d
    return best * 128


def pallas_dwconv(phases, wt, bt, taps, Ho, Wo, act, out_dtype=jnp.bfloat16):
    """phases: (N*P, Hq, Wq, Cp) phase-split padded input (P = stride**2),
    wt: (T, Cp) per-tap per-channel weights (BN scale folded), bt: (1, Cp)."""
    NP, Hq, Wq, Cp = phases.shape
    T = wt.shape[0]
    P = len(set(p for (p, _, _) in taps)) if taps else 1
    P = max(P, 1)
    N = NP // P
    ct = _pick_channel_tile(P, Hq, Wq, Cp)

    kernel = functools.partial(_dwconv_kernel, taps=taps, act=act)
    out = pl.pallas_call(
        kernel,
        out_shape=jax.ShapeDtypeStruct((N, Ho, Wo, Cp), out_dtype),
        grid=(N, Cp // ct),
        in_specs=[
            pl.BlockSpec((P, Hq, Wq, ct), lambda n, c: (n, 0, 0, c)),
            pl.BlockSpec((T, ct), lambda n, c: (0, c)),
            pl.BlockSpec((1, ct), lambda n, c: (0, c)),
        ],
        out_specs=pl.BlockSpec((1, Ho, Wo, ct), lambda n, c: (n, 0, 0, c)),
        compiler_params=pltpu.CompilerParams(
            dimension_semantics=("parallel", "parallel"),
            vmem_limit_bytes=_VMEM_LIMIT),
    )(phases, wt, bt)
    return out


def depthwise_conv2d(x, w, b, stride, act="swish"):
    """TF-'SAME' depthwise conv, NHWC input, w: (KH,KW,C) (BN scale folded).

    No T-fold HBM duplication: stride-s conv is phase-decomposed into s*s
    stride-1 convs on a 1x relayout of the padded input; all taps are summed
    inside a single Pallas grid step per (image, channel-tile)."""
    N, H, W, C = x.shape
    KH, KW, _ = w.shape
    s = int(stride)
    Ho = -(-H // s)
    Wo = -(-W // s)
    ph = max((Ho - 1) * s + KH - H, 0)
    pw = max((Wo - 1) * s + KW - W, 0)
    Cp = _round_up(C, 128)                 # lane-dense channel padding
    xp = jnp.pad(x.astype(jnp.bfloat16),
                 ((0, 0), (ph // 2, ph - ph // 2),
                  (pw // 2, pw - pw // 2), (0, Cp - C)))
    Hp0, Wp0 = H + ph, W + pw
    Hp, Wp = _round_up(Hp0, s), _round_up(Wp0, s)
    if (Hp, Wp) != (Hp0, Wp0):
        xp = jnp.pad(xp, ((0, 0), (0, Hp - Hp0), (0, Wp - Wp0), (0, 0)))

    P = s * s
    Hq, Wq = Hp // s, Wp // s
    if s == 1:
        phases = xp                                            # (N, Hq, Wq, Cp)
    else:
        phases = jnp.stack([xp[:, rh::s, rw::s, :]
                            for rh in range(s) for rw in range(s)], axis=1)
        phases = phases.reshape(N * P, Hq, Wq, Cp)

    taps = tuple(((kh % s) * s + (kw % s), kh // s, kw // s)
                 for kh in range(KH) for kw in range(KW))
    wt = jnp.pad(w.reshape(KH * KW, C).astype(jnp.float32),
                 ((0, 0), (0, Cp - C)))
    bt = jnp.pad(b.astype(jnp.float32), (0, Cp - C)).reshape(1, Cp)

    out = pallas_dwconv(phases, wt, bt, taps, Ho, Wo, act)
    return out[:, :, :, :C]


# ----------------------------------------------------------------------------
# Stem conv (3x3 s2, Cin=3): plain-JAX im2col + dot per review (cheap layer).
# ----------------------------------------------------------------------------
def stem_conv(x, w, b, stride=2, act="swish"):
    # TODO(synk): a halo-gather Pallas kernel would avoid the 9x im2col
    # duplication, but the stem is negligible (K=27) and stays on jnp.dot.
    N, H, W, Cin = x.shape
    KH, KW, _, Cout = w.shape
    s = stride
    Ho = -(-H // s)
    Wo = -(-W // s)
    ph = max((Ho - 1) * s + KH - H, 0)
    pw = max((Wo - 1) * s + KW - W, 0)
    xp = jnp.pad(x, ((0, 0), (ph // 2, ph - ph // 2),
                     (pw // 2, pw - pw // 2), (0, 0)))
    cols = []
    for kh in range(KH):
        for kw in range(KW):
            cols.append(xp[:, kh:kh + (Ho - 1) * s + 1:s,
                           kw:kw + (Wo - 1) * s + 1:s, :])
    a = jnp.concatenate(cols, axis=-1).reshape(N * Ho * Wo, KH * KW * Cin)
    y = a.astype(jnp.float32) @ w.reshape(KH * KW * Cin, Cout).astype(jnp.float32)
    y = _apply_act(y + b.astype(jnp.float32), act)
    return y.astype(jnp.bfloat16).reshape(N, Ho, Wo, Cout)


# ----------------------------------------------------------------------------
# Deterministic parameter construction (efficientnet-b4 scaled config)
# ----------------------------------------------------------------------------
B4_BLOCKS = [
    # (repeats, kernel, stride, expand, in_ch, out_ch, se_ratio)
    (2, 3, 1, 1, 48, 24, 0.25),
    (4, 3, 2, 6, 24, 32, 0.25),
    (4, 5, 2, 6, 32, 56, 0.25),
    (6, 3, 2, 6, 56, 112, 0.25),
    (6, 5, 1, 6, 112, 160, 0.25),
    (8, 5, 2, 6, 160, 272, 0.25),
    (2, 3, 1, 6, 272, 448, 0.25),
]
STEM_CH = 48
HEAD_CH = 1792
NUM_CLASSES = 1000


class _KeyGen:
    def __init__(self, seed):
        self._key = jax.random.PRNGKey(seed)

    def __call__(self):
        self._key, sub = jax.random.split(self._key)
        return sub


def _init_conv(kg, kh, kw, cin, cout):
    fan_in = kh * kw * cin
    return jax.random.normal(kg(), (kh, kw, cin, cout), jnp.float32) / np.sqrt(fan_in)


def _init_dwconv(kg, kh, kw, c):
    fan_in = kh * kw
    return jax.random.normal(kg(), (kh, kw, c), jnp.float32) / np.sqrt(fan_in)


def _init_bn(c):
    gamma = jnp.ones((c,), jnp.float32)
    beta = jnp.zeros((c,), jnp.float32)
    mean = jnp.zeros((c,), jnp.float32)
    var = jnp.ones((c,), jnp.float32)
    scale = gamma / jnp.sqrt(var + BN_EPS)
    bias = beta - mean * scale
    return {"scale": scale, "bias": bias}


def _fold_bn_conv(w, bn):
    """Fold eval-mode BN into a conv: y = conv(x, w*scale) + bias."""
    wf = (w * bn["scale"].reshape(1, 1, 1, -1)).astype(jnp.bfloat16)
    return wf, bn["bias"].astype(jnp.float32)


def _fold_bn_dw(w, bn):
    wf = (w * bn["scale"].reshape(1, 1, -1)).astype(jnp.float32)
    return wf, bn["bias"].astype(jnp.float32)


def _init_linear(kg, cin, cout):
    w = jax.random.normal(kg(), (cin, cout), jnp.float32) / np.sqrt(cin)
    b = jnp.zeros((cout,), jnp.float32)
    return {"w": w, "b": b}


def init_params(seed=0):
    kg = _KeyGen(seed)
    p = {}
    w, b = _fold_bn_conv(_init_conv(kg, 3, 3, 3, STEM_CH), _init_bn(STEM_CH))
    p["stem"] = {"w": w, "b": b}

    blocks = []
    for (reps, k, s, e, ci, co, se) in B4_BLOCKS:
        for rep in range(reps):
            cin = ci if rep == 0 else co
            stride = s if rep == 0 else 1
            mid = cin * e
            bp = {"stride": stride, "expand": e, "kernel": k, "cin": cin, "cout": co}
            if e != 1:
                ew, eb = _fold_bn_conv(_init_conv(kg, 1, 1, cin, mid), _init_bn(mid))
                bp["expand_w"], bp["expand_b"] = ew, eb
            dw, db = _fold_bn_dw(_init_dwconv(kg, k, k, mid), _init_bn(mid))
            bp["dw_w"], bp["dw_b"] = dw, db
            se_ch = max(1, int(cin * se))
            bp["se_reduce"] = _init_linear(kg, mid, se_ch)
            bp["se_expand"] = _init_linear(kg, se_ch, mid)
            pw, pb = _fold_bn_conv(_init_conv(kg, 1, 1, mid, co), _init_bn(co))
            bp["project_w"], bp["project_b"] = pw, pb
            blocks.append(bp)
    p["blocks"] = blocks

    hw, hb = _fold_bn_conv(_init_conv(kg, 1, 1, B4_BLOCKS[-1][5], HEAD_CH),
                           _init_bn(HEAD_CH))
    p["head"] = {"w": hw, "b": hb}
    p["classifier"] = _init_linear(kg, HEAD_CH, NUM_CLASSES)   # backbone._fc
    p["fc1"] = _init_linear(kg, NUM_CLASSES, 256)              # Linear(1000,256)
    p["fc2"] = _init_linear(kg, 256, 18)                       # Linear(256,18)
    return p


# ----------------------------------------------------------------------------
# Forward pass
# ----------------------------------------------------------------------------
def _mbconv(x, bp):
    inputs = x
    if bp["expand"] != 1:
        x = conv1x1(x, bp["expand_w"], bp["expand_b"], act="swish")
    x = depthwise_conv2d(x, bp["dw_w"], bp["dw_b"], bp["stride"], act="swish")
    # Squeeze-and-Excitation: M=batch micro-matmuls -> plain JAX (latency-bound).
    N, H, W, C = x.shape
    pooled = jnp.mean(x.astype(jnp.float32), axis=(1, 2))          # (N, C)
    s = jax.nn.silu(pooled @ bp["se_reduce"]["w"] + bp["se_reduce"]["b"])
    g = jax.nn.sigmoid(s @ bp["se_expand"]["w"] + bp["se_expand"]["b"])   # (N, C)
    use_res = bp["stride"] == 1 and bp["cin"] == bp["cout"]
    # SE gate and the residual add are fused into the project-conv kernel.
    # TODO(synk): drop_connect is identity in eval mode (inference semantics).
    x = conv1x1(x, bp["project_w"], bp["project_b"], act="none",
                gate=g, residual=inputs if use_res else None)
    return x


def efficientnet_b4_timm_forward(params, x_nchw):
    x = jnp.transpose(x_nchw, (0, 2, 3, 1)).astype(jnp.bfloat16)   # NCHW -> NHWC
    x = stem_conv(x, params["stem"]["w"], params["stem"]["b"], stride=2, act="swish")
    for bp in params["blocks"]:
        x = _mbconv(x, bp)
    x = conv1x1(x, params["head"]["w"], params["head"]["b"], act="swish")
    feat = jnp.mean(x.astype(jnp.float32), axis=(1, 2))            # (N, 1792)
    # backbone dropout(0.4) and head nn.Dropout(0.1): identity in eval mode.
    # Classifier / fc head: M = batch micro-matmuls -> plain JAX per review.
    logits1000 = feat @ params["classifier"]["w"] + params["classifier"]["b"]
    h = jnp.maximum(logits1000 @ params["fc1"]["w"] + params["fc1"]["b"], 0.0)
    out = h @ params["fc2"]["w"] + params["fc2"]["b"]
    return out  # (N, 18)


if __name__ == "__main__":
    params = init_params(seed=0)
    key = jax.random.PRNGKey(0)
    x = jax.random.normal(key, (2, 3, 32, 32), jnp.float32)  # NCHW like PyTorch
    out = efficientnet_b4_timm_forward(params, x)
    out = jax.block_until_ready(out)
    assert out.shape == (2, 18), out.shape
    assert bool(jnp.all(jnp.isfinite(out)))
    print("KERNEL_OK")
</pallas_src>

<mosaic_0001>
module attributes {stable_mosaic.version = 11 : i64} {
  func.func @_dwconv_kernel(%arg0: i32, %arg1: i32, %arg2: memref<1x18x18x128xbf16, #tpu.memory_space<vmem>>, %arg3: memref<9x128xf32, #tpu.memory_space<vmem>>, %arg4: memref<1x128xf32, #tpu.memory_space<vmem>>, %arg5: memref<1x16x16x128xbf16, #tpu.memory_space<vmem>>) attributes {dimension_semantics = [#tpu.dimension_semantics<parallel>, #tpu.dimension_semantics<parallel>], iteration_bounds = array<i64: 2, 1>, scalar_prefetch = 0 : i64, scratch_operands = 0 : i64, tpu.core_type = #tpu.core_type<tc>, window_params = [{transform_indices = @transform_0, window_bounds = array<i64: 1, 18, 18, 128>}, {transform_indices = @transform_1, window_bounds = array<i64: 9, 128>}, {transform_indices = @transform_2, window_bounds = array<i64: 1, 128>}, {transform_indices = @transform_3, window_bounds = array<i64: 1, 16, 16, 128>}]} {
    %cst = arith.constant 0.000000e+00 : f32
    %0 = vector.broadcast %cst : f32 to vector<16x16x128xf32>
    %c0 = arith.constant 0 : index
    %c0_0 = arith.constant 0 : index
    %c0_1 = arith.constant 0 : index
    %c0_2 = arith.constant 0 : index
    %1 = vector.load %arg2[%c0, %c0_0, %c0_1, %c0_2] : memref<1x18x18x128xbf16, #tpu.memory_space<vmem>>, vector<1x16x16x128xbf16>
    %2 = vector.shape_cast %1 : vector<1x16x16x128xbf16> to vector<16x16x128xbf16>
    %3 = arith.extf %2 : vector<16x16x128xbf16> to vector<16x16x128xf32>
    %c0_3 = arith.constant 0 : index
    %c0_4 = arith.constant 0 : index
    %4 = vector.load %arg3[%c0_3, %c0_4] : memref<9x128xf32, #tpu.memory_space<vmem>>, vector<1x128xf32>
    %5 = vector.shape_cast %4 : vector<1x128xf32> to vector<128xf32>
    %6 = vector.shape_cast %5 : vector<128xf32> to vector<1x1x128xf32>
    %7 = vector.broadcast %6 : vector<1x1x128xf32> to vector<16x16x128xf32>
    %8 = arith.mulf %3, %7 : vector<16x16x128xf32>
    %9 = arith.addf %0, %8 : vector<16x16x128xf32>
    %c0_5 = arith.constant 0 : index
    %c0_6 = arith.constant 0 : index
    %c1 = arith.constant 1 : index
    %c0_7 = arith.constant 0 : index
    %10 = vector.load %arg2[%c0_5, %c0_6, %c1, %c0_7] : memref<1x18x18x128xbf16, #tpu.memory_space<vmem>>, vector<1x16x16x128xbf16>
    %11 = vector.shape_cast %10 : vector<1x16x16x128xbf16> to vector<16x16x128xbf16>
    %12 = arith.extf %11 : vector<16x16x128xbf16> to vector<16x16x128xf32>
    %c1_8 = arith.constant 1 : index
    %c0_9 = arith.constant 0 : index
    %13 = vector.load %arg3[%c1_8, %c0_9] : memref<9x128xf32, #tpu.memory_space<vmem>>, vector<1x128xf32>
    %14 = vector.shape_cast %13 : vector<1x128xf32> to vector<128xf32>
    %15 = vector.shape_cast %14 : vector<128xf32> to vector<1x1x128xf32>
    %16 = vector.broadcast %15 : vector<1x1x128xf32> to vector<16x16x128xf32>
    %17 = arith.mulf %12, %16 : vector<16x16x128xf32>
    %18 = arith.addf %9, %17 : vector<16x16x128xf32>
    %c0_10 = arith.constant 0 : index
    %c0_11 = arith.constant 0 : index
    %c2 = arith.constant 2 : index
    %c0_12 = arith.constant 0 : index
    %19 = vector.load %arg2[%c0_10, %c0_11, %c2, %c0_12] : memref<1x18x18x128xbf16, #tpu.memory_space<vmem>>, vector<1x16x16x128xbf16>
    %20 = vector.shape_cast %19 : vector<1x16x16x128xbf16> to vector<16x16x128xbf16>
    %21 = arith.extf %20 : vector<16x16x128xbf16> to vector<16x16x128xf32>
    %c2_13 = arith.constant 2 : index
    %c0_14 = arith.constant 0 : index
    %22 = vector.load %arg3[%c2_13, %c0_14] : memref<9x128xf32, #tpu.memory_space<vmem>>, vector<1x128xf32>
    %23 = vector.shape_cast %22 : vector<1x128xf32> to vector<128xf32>
    %24 = vector.shape_cast %23 : vector<128xf32> to vector<1x1x128xf32>
    %25 = vector.broadcast %24 : vector<1x1x128xf32> to vector<16x16x128xf32>
    %26 = arith.mulf %21, %25 : vector<16x16x128xf32>
    %27 = arith.addf %18, %26 : vector<16x16x128xf32>
    %c0_15 = arith.constant 0 : index
    %c1_16 = arith.constant 1 : index
    %c0_17 = arith.constant 0 : index
    %c0_18 = arith.constant 0 : index
    %28 = vector.load %arg2[%c0_15, %c1_16, %c0_17, %c0_18] : memref<1x18x18x128xbf16, #tpu.memory_space<vmem>>, vector<1x16x16x128xbf16>
    %29 = vector.shape_cast %28 : vector<1x16x16x128xbf16> to vector<16x16x128xbf16>
    %30 = arith.extf %29 : vector<16x16x128xbf16> to vector<16x16x128xf32>
    %c3 = arith.constant 3 : index
    %c0_19 = arith.constant 0 : index
    %31 = vector.load %arg3[%c3, %c0_19] : memref<9x128xf32, #tpu.memory_space<vmem>>, vector<1x128xf32>
    %32 = vector.shape_cast %31 : vector<1x128xf32> to vector<128xf32>
    %33 = vector.shape_cast %32 : vector<128xf32> to vector<1x1x128xf32>
    %34 = vector.broadcast %33 : vector<1x1x128xf32> to vector<16x16x128xf32>
    %35 = arith.mulf %30, %34 : vector<16x16x128xf32>
    %36 = arith.addf %27, %35 : vector<16x16x128xf32>
    %c0_20 = arith.constant 0 : index
    %c1_21 = arith.constant 1 : index
    %c1_22 = arith.constant 1 : index
    %c0_23 = arith.constant 0 : index
    %37 = vector.load %arg2[%c0_20, %c1_21, %c1_22, %c0_23] : memref<1x18x18x128xbf16, #tpu.memory_space<vmem>>, vector<1x16x16x128xbf16>
    %38 = vector.shape_cast %37 : vector<1x16x16x128xbf16> to vector<16x16x128xbf16>
    %39 = arith.extf %38 : vector<16x16x128xbf16> to vector<16x16x128xf32>
    %c4 = arith.constant 4 : index
    %c0_24 = arith.constant 0 : index
    %40 = vector.load %arg3[%c4, %c0_24] : memref<9x128xf32, #tpu.memory_space<vmem>>, vector<1x128xf32>
    %41 = vector.shape_cast %40 : vector<1x128xf32> to vector<128xf32>
    %42 = vector.shape_cast %41 : vector<128xf32> to vector<1x1x128xf32>
    %43 = vector.broadcast %42 : vector<1x1x128xf32> to vector<16x16x128xf32>
    %44 = arith.mulf %39, %43 : vector<16x16x128xf32>
    %45 = arith.addf %36, %44 : vector<16x16x128xf32>
    %c0_25 = arith.constant 0 : index
    %c1_26 = arith.constant 1 : index
    %c2_27 = arith.constant 2 : index
    %c0_28 = arith.constant 0 : index
    %46 = vector.load %arg2[%c0_25, %c1_26, %c2_27, %c0_28] : memref<1x18x18x128xbf16, #tpu.memory_space<vmem>>, vector<1x16x16x128xbf16>
    %47 = vector.shape_cast %46 : vector<1x16x16x128xbf16> to vector<16x16x128xbf16>
    %48 = arith.extf %47 : vector<16x16x128xbf16> to vector<16x16x128xf32>
    %c5 = arith.constant 5 : index
    %c0_29 = arith.constant 0 : index
    %49 = vector.load %arg3[%c5, %c0_29] : memref<9x128xf32, #tpu.memory_space<vmem>>, vector<1x128xf32>
    %50 = vector.shape_cast %49 : vector<1x128xf32> to vector<128xf32>
    %51 = vector.shape_cast %50 : vector<128xf32> to vector<1x1x128xf32>
    %52 = vector.broadcast %51 : vector<1x1x128xf32> to vector<16x16x128xf32>
    %53 = arith.mulf %48, %52 : vector<16x16x128xf32>
    %54 = arith.addf %45, %53 : vector<16x16x128xf32>
    %c0_30 = arith.constant 0 : index
    %c2_31 = arith.constant 2 : index
    %c0_32 = arith.constant 0 : index
    %c0_33 = arith.constant 0 : index
    %55 = vector.load %arg2[%c0_30, %c2_31, %c0_32, %c0_33] : memref<1x18x18x128xbf16, #tpu.memory_space<vmem>>, vector<1x16x16x128xbf16>
    %56 = vector.shape_cast %55 : vector<1x16x16x128xbf16> to vector<16x16x128xbf16>
    %57 = arith.extf %56 : vector<16x16x128xbf16> to vector<16x16x128xf32>
    %c6 = arith.constant 6 : index
    %c0_34 = arith.constant 0 : index
    %58 = vector.load %arg3[%c6, %c0_34] : memref<9x128xf32, #tpu.memory_space<vmem>>, vector<1x128xf32>
    %59 = vector.shape_cast %58 : vector<1x128xf32> to vector<128xf32>
    %60 = vector.shape_cast %59 : vector<128xf32> to vector<1x1x128xf32>
    %61 = vector.broadcast %60 : vector<1x1x128xf32> to vector<16x16x128xf32>
    %62 = arith.mulf %57, %61 : vector<16x16x128xf32>
    %63 = arith.addf %54, %62 : vector<16x16x128xf32>
    %c0_35 = arith.constant 0 : index
    %c2_36 = arith.constant 2 : index
    %c1_37 = arith.constant 1 : index
    %c0_38 = arith.constant 0 : index
    %64 = vector.load %arg2[%c0_35, %c2_36, %c1_37, %c0_38] : memref<1x18x18x128xbf16, #tpu.memory_space<vmem>>, vector<1x16x16x128xbf16>
    %65 = vector.shape_cast %64 : vector<1x16x16x128xbf16> to vector<16x16x128xbf16>
    %66 = arith.extf %65 : vector<16x16x128xbf16> to vector<16x16x128xf32>
    %c7 = arith.constant 7 : index
    %c0_39 = arith.constant 0 : index
    %67 = vector.load %arg3[%c7, %c0_39] : memref<9x128xf32, #tpu.memory_space<vmem>>, vector<1x128xf32>
    %68 = vector.shape_cast %67 : vector<1x128xf32> to vector<128xf32>
    %69 = vector.shape_cast %68 : vector<128xf32> to vector<1x1x128xf32>
    %70 = vector.broadcast %69 : vector<1x1x128xf32> to vector<16x16x128xf32>
    %71 = arith.mulf %66, %70 : vector<16x16x128xf32>
    %72 = arith.addf %63, %71 : vector<16x16x128xf32>
    %c0_40 = arith.constant 0 : index
    %c2_41 = arith.constant 2 : index
    %c2_42 = arith.constant 2 : index
    %c0_43 = arith.constant 0 : index
    %73 = vector.load %arg2[%c0_40, %c2_41, %c2_42, %c0_43] : memref<1x18x18x128xbf16, #tpu.memory_space<vmem>>, vector<1x16x16x128xbf16>
    %74 = vector.shape_cast %73 : vector<1x16x16x128xbf16> to vector<16x16x128xbf16>
    %75 = arith.extf %74 : vector<16x16x128xbf16> to vector<16x16x128xf32>
    %c8 = arith.constant 8 : index
    %c0_44 = arith.constant 0 : index
    %76 = vector.load %arg3[%c8, %c0_44] : memref<9x128xf32, #tpu.memory_space<vmem>>, vector<1x128xf32>
    %77 = vector.shape_cast %76 : vector<1x128xf32> to vector<128xf32>
    %78 = vector.shape_cast %77 : vector<128xf32> to vector<1x1x128xf32>
    %79 = vector.broadcast %78 : vector<1x1x128xf32> to vector<16x16x128xf32>
    %80 = arith.mulf %75, %79 : vector<16x16x128xf32>
    %81 = arith.addf %72, %80 : vector<16x16x128xf32>
    %c0_45 = arith.constant 0 : index
    %c0_46 = arith.constant 0 : index
    %82 = vector.load %arg4[%c0_45, %c0_46] : memref<1x128xf32, #tpu.memory_space<vmem>>, vector<1x128xf32>
    %83 = vector.shape_cast %82 : vector<1x128xf32> to vector<128xf32>
    %84 = vector.shape_cast %83 : vector<128xf32> to vector<1x1x128xf32>
    %85 = vector.broadcast %84 : vector<1x1x128xf32> to vector<16x16x128xf32>
    %86 = arith.addf %81, %85 : vector<16x16x128xf32>
    %cst_47 = arith.constant 5.000000e-01 : f32
    %87 = vector.broadcast %cst_47 : f32 to vector<16x16x128xf32>
    %88 = arith.mulf %87, %86 : vector<16x16x128xf32>
    %89 = math.tanh %88 : vector<16x16x128xf32>
    %cst_48 = arith.constant 5.000000e-01 : f32
    %90 = vector.broadcast %cst_48 : f32 to vector<16x16x128xf32>
    %91 = arith.mulf %90, %89 : vector<16x16x128xf32>
    %cst_49 = arith.constant 5.000000e-01 : f32
    %92 = vector.broadcast %cst_49 : f32 to vector<16x16x128xf32>
    %93 = arith.addf %91, %92 : vector<16x16x128xf32>
    %94 = arith.mulf %86, %93 : vector<16x16x128xf32>
    %95 = arith.truncf %94 : vector<16x16x128xf32> to vector<16x16x128xbf16>
    %c0_50 = arith.constant 0 : index
    %c0_51 = arith.constant 0 : index
    %c0_52 = arith.constant 0 : index
    %c0_53 = arith.constant 0 : index
    %96 = vector.load %arg5[%c0_50, %c0_51, %c0_52, %c0_53] : memref<1x16x16x128xbf16, #tpu.memory_space<vmem>>, vector<1x16x16x128xbf16>
    %97 = vector.shape_cast %96 : vector<1x16x16x128xbf16> to vector<16x16x128xbf16>
    %98 = vector.shape_cast %95 : vector<16x16x128xbf16> to vector<1x16x16x128xbf16>
    tpu.vector_store %arg5[%c0_50, %c0_51, %c0_52, %c0_53], %98 {strides = array<i32>} : memref<1x16x16x128xbf16, #tpu.memory_space<vmem>>, vector<1x16x16x128xbf16>,
    return
  }
  func.func @transform_0(%arg0: i32, %arg1: i32) -> (i32, i32, i32, i32) {
    %c0_i32 = arith.constant 0 : i32
    %c0_i32_0 = arith.constant 0 : i32
    %c0_i32_1 = arith.constant 0 : i32
    return %arg0, %c0_i32, %c0_i32_0, %arg1 : i32, i32, i32, i32
  }
  func.func @transform_1(%arg0: i32, %arg1: i32) -> (i32, i32) {
    %c0_i32 = arith.constant 0 : i32
    %c0_i32_0 = arith.constant 0 : i32
    return %c0_i32, %arg1 : i32, i32
  }
  func.func @transform_2(%arg0: i32, %arg1: i32) -> (i32, i32) {
    %c0_i32 = arith.constant 0 : i32
    %c0_i32_0 = arith.constant 0 : i32
    return %c0_i32, %arg1 : i32, i32
  }
  func.func @transform_3(%arg0: i32, %arg1: i32) -> (i32, i32, i32, i32) {
    %c0_i32 = arith.constant 0 : i32
    %c0_i32_0 = arith.constant 0 : i32
    %c0_i32_1 = arith.constant 0 : i32
    return %arg0, %c0_i32, %c0_i32_0, %arg1 : i32, i32, i32, i32
  }
}

</mosaic_0001>

<llo_original>
// kernel: tpu_custom_call.1
$region0: #{tpu_custom_call.1}
  #allocation0 [shape = 'u32[]', space=smem, size = 0x4, offset = 0x4, fixed_abs, tag = 'smem constant byte address 0x4 - core index']
  #allocation1 [shape = 'u32[144,128]{1,0:T(1,128)}', space=vmem, size = 0x12000, scoped, tag = 'internal scratch']
  %s0 = inlined_call_operand.vmem [shape: bf16[2,18,18,128], index: 0, kind: input, shape index: {}]
  %s1 = inlined_call_operand.vmem [shape: f32[9,128], index: 1, kind: input, shape index: {}]
  %s2 = inlined_call_operand.vmem [shape: f32[1,128], index: 2, kind: input, shape index: {}]
  %s3 = inlined_call_operand.hbm [shape: bf16[2,16,16,128], index: 3, kind: output, shape index: {}]
  %s4 = sld [smem:[#allocation0]]
  $region45: #{tpu_custom_call.1} parent=0
    _
  %s6 = ssub.s32 1, %s4
  %s7 = scalar_select 0, %s6, %s4
  $region1: #{tpu_custom_call.1} parent=0
    #allocation2 [shape = 'u8[131072]{0}', space=vmem, size = 0x20000, scoped, tag = 'output window, operand 0']
    #allocation3 [shape = 's32[2]{0}', space=sflag, size = 0x8, scoped, tag = 'scoped memory for tpu_custom_call.1']
    %8 = vsyncpa [#allocation3], 0
    %s9 = scalar_lea.sflag [#allocation3], 1
    %10 = vsyncpa %s9, 0
    loop: start=0, step=1, limit=4
    $region2: #{tpu_custom_call.1} parent=1 // loop_pre_header
      _
    $region3: #{tpu_custom_call.1} parent=1 // loop_header
      %s12 = sphi 0, %s16
      %p13 = scmp.ge.s32.totalorder %s12, 4
      %s19 = sphi 0, %s31
      %s20 = sphi 0, %s27
      %s21 = sphi 0, %s19
      %s22 = sphi 0, %s20
      %s23 = sphi 0, %s21
      %s24 = sphi 0, %s22
      %s36 = sphi 0, %s38
      %s39 = sphi 0, %s36
      %s40 = sphi 0, %s39
      %s56 = sphi 0, %s40
      %s62 = sphi 0, %s64
      %s65 = sphi 0, %s62
      %s66 = sphi 0, %s65
      %s82 = sphi 0, %s66
      %s88 = sphi 0, %s90
      %s91 = sphi 0, %s88
      %s92 = sphi 0, %s91
      %s108 = sphi 0, %s92
      %s116 = sphi 0, %s118
      %s119 = sphi 0, %s116
      %s120 = sphi 0, %s119
      %s136 = sphi 0, %s120
    $region4: #{tpu_custom_call.1} parent=1 // loop_header_branch
      %15 = sbr.rel (%p13) target = $region8
    $region5: #{tpu_custom_call.1} parent=1 // loop_body
      %s17 = ssub.s32 %s12, 1
      %s18 = ssub.s32 %s12, 2
      %s25 = sadd.s32 1, %s20
      %p26 = scmp.ge.s32.totalorder %s25, 1
      %s27 = scalar_select %p26, 0, %s25
      %s28 = sadd.s32 1, %s19
      %s29 = scalar_select %p26, %s28, %s19
      %p30 = scmp.ge.s32.totalorder %s29, 2
      %s31 = scalar_select %p30, 0, %s29
      %s32 = ssub.s32 %s19, %s31
      %s33 = ssub.s32 %s20, %s27
      %s34 = sor.u32 %s32, %s33
      %p35 = scmp.eq.s32.totalorder %s34, 0
      %s37 = sadd.s32 %s36, 1
      %s38 = scalar_select %p35, %s36, %s37
      %p41 = pneg %p35
      %p42 = scmp.eq.s32.totalorder %s12, 1
      %p43 = por %p41, %p42
      %p44 = scmp.ne.s32.totalorder %s36, %s39
      %p45 = scmp.eq.s32.totalorder %s12, 0
      %p46 = por %p44, %p45
      %p47 = scmp.ne.s32.totalorder %s36, %s39
      %p48 = scmp.eq.s32.totalorder %s17, 1
      %p49 = por %p47, %p48
      %p50 = scmp.ne.s32.totalorder %s39, %s40
      %p51 = scmp.eq.s32.totalorder %s17, 0
      %p52 = por %p50, %p51
      %p53 = scmp.ne.s32.totalorder %s39, %s40
      %p54 = scmp.eq.s32.totalorder %s18, 1
      %p55 = por %p53, %p54
      %p57 = scmp.ne.s32.totalorder %s40, %s56
      %p58 = scmp.eq.s32.totalorder %s18, 0
      %p59 = por %p57, %p58
      %s60 = ssub.s32 %s20, %s27
      %p61 = scmp.eq.s32.totalorder %s60, 0
      %s63 = sadd.s32 %s62, 1
      %s64 = scalar_select %p61, %s62, %s63
      %p67 = pneg %p61
      %p68 = scmp.eq.s32.totalorder %s12, 1
      %p69 = por %p67, %p68
      %p70 = scmp.ne.s32.totalorder %s62, %s65
      %p71 = scmp.eq.s32.totalorder %s12, 0
      %p72 = por %p70, %p71
      %p73 = scmp.ne.s32.totalorder %s62, %s65
      %p74 = scmp.eq.s32.totalorder %s17, 1
      %p75 = por %p73, %p74
      %p76 = scmp.ne.s32.totalorder %s65, %s66
      %p77 = scmp.eq.s32.totalorder %s17, 0
      %p78 = por %p76, %p77
      %p79 = scmp.ne.s32.totalorder %s65, %s66
      %p80 = scmp.eq.s32.totalorder %s18, 1
      %p81 = por %p79, %p80
      %p83 = scmp.ne.s32.totalorder %s66, %s82
      %p84 = scmp.eq.s32.totalorder %s18, 0
      %p85 = por %p83, %p84
      %s86 = ssub.s32 %s20, %s27
      %p87 = scmp.eq.s32.totalorder %s86, 0
      %s89 = sadd.s32 %s88, 1
      %s90 = scalar_select %p87, %s88, %s89
      %p93 = pneg %p87
      %p94 = scmp.eq.s32.totalorder %s12, 1
      %p95 = por %p93, %p94
      %p96 = scmp.ne.s32.totalorder %s88, %s91
      %p97 = scmp.eq.s32.totalorder %s12, 0
      %p98 = por %p96, %p97
      %p99 = scmp.ne.s32.totalorder %s88, %s91
      %p100 = scmp.eq.s32.totalorder %s17, 1
      %p101 = por %p99, %p100
      %p102 = scmp.ne.s32.totalorder %s91, %s92
      %p103 = scmp.eq.s32.totalorder %s17, 0
      %p104 = por %p102, %p103
      %p105 = scmp.ne.s32.totalorder %s91, %s92
      %p106 = scmp.eq.s32.totalorder %s18, 1
      %p107 = por %p105, %p106
      %p109 = scmp.ne.s32.totalorder %s92, %s108
      %p110 = scmp.eq.s32.totalorder %s18, 0
      %p111 = por %p109, %p110
      %s112 = ssub.s32 %s19, %s31
      %s113 = ssub.s32 %s20, %s27
      %s114 = sor.u32 %s112, %s113
      %p115 = scmp.eq.s32.totalorder %s114, 0
      %s117 = sadd.s32 %s116, 1
      %s118 = scalar_select %p115, %s116, %s117
      %p121 = pneg %p115
      %p122 = scmp.eq.s32.totalorder %s12, 1
      %p123 = por %p121, %p122
      %p124 = scmp.ne.s32.totalorder %s116, %s119
      %p125 = scmp.eq.s32.totalorder %s12, 0
      %p126 = por %p124, %p125
      %p127 = scmp.ne.s32.totalorder %s116, %s119
      %p128 = scmp.eq.s32.totalorder %s17, 1
      %p129 = por %p127, %p128
      %p130 = scmp.ne.s32.totalorder %s119, %s120
      %p131 = scmp.eq.s32.totalorder %s17, 0
      %p132 = por %p130, %p131
      %p133 = scmp.ne.s32.totalorder %s119, %s120
      %p134 = scmp.eq.s32.totalorder %s18, 1
      %p135 = por %p133, %p134
      %p137 = scmp.ne.s32.totalorder %s120, %s136
      %p138 = scmp.eq.s32.totalorder %s18, 0
      %p139 = por %p137, %p138
      %p140 = scmp.le.s32.totalorder 1, %s12
      %p141 = scmp.lt.s32.totalorder %s12, 3
      %p142 = pnand %p140, %p141
      %p143 = pneg %p142
      // Predicated region
      $region9: #{tpu_custom_call.1} parent=5 // pred_check
        _
      $region10: #{tpu_custom_call.1} parent=5 // pred_check_branch
        %145 = sbr.rel (%p142) target = $region12
      $region11: #{tpu_custom_call.1} parent=5 // pred_region
        %s146 = ssub.s32 %s12, 1
        // Predicated region
        $region13: #{tpu_custom_call.1} parent=11 // pred_check
          %p147 = pneg %p78
        $region14: #{tpu_custom_call.1} parent=11 // pred_check_branch
          %149 = sbr.rel (%p147) target = $region16
        $region15: #{tpu_custom_call.1} parent=11 // pred_region
          %p150 = scmp.lt.s32.totalorder %s22, 0
          %s151 = scalar_select %p150, %s22, 0
          %s152 = smul.addr %s151, 8
          %s153 = scalar_lea.vmem %s1, %s152
        $region16: #{tpu_custom_call.1} parent=11 // pred_fallthru
          _
        // Predicated region
        $region17: #{tpu_custom_call.1} parent=11 // pred_check
          %p154 = pneg %p104
        $region18: #{tpu_custom_call.1} parent=11 // pred_check_branch
          %156 = sbr.rel (%p154) target = $region20
        $region19: #{tpu_custom_call.1} parent=11 // pred_region
          %p157 = scmp.lt.s32.totalorder %s22, 0
          %s158 = scalar_select %p157, %s22, 0
          %s159 = scalar_lea.vmem %s2, %s158
        $region20: #{tpu_custom_call.1} parent=11 // pred_fallthru
          _
      $region12: #{tpu_custom_call.1} parent=5 // pred_fallthru
        _
      %p160 = scmp.lt.s32.totalorder %s12, 2
      // Predicated region
      $region21: #{tpu_custom_call.1} parent=5 // pred_check
        %p161 = pneg %p160
      $region22: #{tpu_custom_call.1} parent=5 // pred_check_branch
        %163 = sbr.rel (%p161) target = $region24
      $region23: #{tpu_custom_call.1} parent=5 // pred_region
        // Predicated region
        $region25: #{tpu_custom_call.1} parent=23 // pred_check
          %p164 = pneg %p46
        $region26: #{tpu_custom_call.1} parent=23 // pred_check_branch
          %166 = sbr.rel (%p164) target = $region28
        $region27: #{tpu_custom_call.1} parent=23 // pred_region
          %p167 = scmp.lt.s32.totalorder %s19, 1
          %s168 = scalar_select %p167, %s19, 1
          %p169 = scmp.lt.s32.totalorder %s20, 0
          %s170 = scalar_select %p169, %s20, 0
          %s171 = smul.addr %s168, 54
          %s172 = sadd.s32 %s170, %s171
          %s173 = smul.addr %s172, 4
          %s174 = scalar_lea.vmem %s0, %s173
        $region28: #{tpu_custom_call.1} parent=23 // pred_fallthru
          _
      $region24: #{tpu_custom_call.1} parent=5 // pred_fallthru
        _
      %p175 = scmp.le.s32.totalorder 1, %s12
      %p176 = scmp.lt.s32.totalorder %s12, 3
      %p177 = pnand %p175, %p176
      %p178 = pneg %p177
      // Predicated region
      $region29: #{tpu_custom_call.1} parent=5 // pred_check
        _
      $region30: #{tpu_custom_call.1} parent=5 // pred_check_branch
        %180 = sbr.rel (%p177) target = $region32
      $region31: #{tpu_custom_call.1} parent=5 // pred_region
        %s181 = ssub.s32 %s12, 1
        %p182 = scmp.lt.s32.totalorder %s21, 1
        %s183 = scalar_select %p182, %s21, 1
        %p184 = scmp.lt.s32.totalorder %s22, 0
        %s185 = scalar_select %p184, %s22, 0
        %s186 = smul.addr %s183, 54
        %s187 = sadd.s32 %s185, %s186
        %s188 = smul.addr %s187, 4
        %s189 = scalar_lea.vmem %s0, %s188
        %p190 = pneg %p52
        %p191 = pneg %p49
        %p192 = scmp.lt.s32.totalorder %s22, 0
        %s193 = scalar_select %p192, %s22, 0
        %s194 = smul.addr %s193, 8
        %s195 = scalar_lea.vmem %s1, %s194
        %p196 = pneg %p78
        %p197 = pneg %p75
        %p198 = scmp.lt.s32.totalorder %s22, 0
        %s199 = scalar_select %p198, %s22, 0
        %s200 = scalar_lea.vmem %s2, %s199
        %p201 = pneg %p104
        %p202 = pneg %p101
        %p203 = pneg %p132
        %p204 = pneg %p129
        %s205 = sand.u32 %s119, 1
        %s206 = scalar_lea.sflag [#allocation3], %s205
        %s207 = sand.u32 %s119, 1
        %s208 = smul.addr %s207, 128
        %s209 = scalar_lea.vmem [#allocation2], %s208
        %p210 = scmp.lt.s32.totalorder %s21, 1
        %s211 = scalar_select %p210, %s21, 1
        %p212 = scmp.lt.s32.totalorder %s22, 0
        %s213 = scalar_select %p212, %s22, 0
        %s214 = smul.addr %s211, 54
        %s215 = sadd.s32 %s213, %s214
        %s216 = smul.addr %s215, 4
        %s217 = scalar_lea.vmem %s0, %s216
        %p218 = scmp.lt.s32.totalorder %s22, 0
        %s219 = scalar_select %p218, %s22, 0
        %s220 = smul.addr %s219, 8
        %s221 = scalar_lea.vmem %s1, %s220
        %p222 = scmp.lt.s32.totalorder %s22, 0
        %s223 = scalar_select %p222, %s22, 0
        %s224 = scalar_lea.vmem %s2, %s223
        %v225 = vld [vmem:[%s217] sm:$0xf]
        %v226 = vld [vmem:[%s217 + $0x4] sm:$0xf]
        %v227 = vld [vmem:[%s217 + $0xc] sm:$0xf]
        %v228 = vld [vmem:[%s217 + $0x10] sm:$0xf]
        %v229 = vld [vmem:[%s217 + $0x18] sm:$0xf]
        %v230 = vld [vmem:[%s217 + $0x1c] sm:$0xf]
        %v231 = vld [vmem:[%s217 + $0x24] sm:$0xf]
        %v232 = vld [vmem:[%s217 + $0x28] sm:$0xf]
        %v233 = vld [vmem:[%s217 + $0x30] sm:$0xf]
        %v234 = vld [vmem:[%s217 + $0x34] sm:$0xf]
        %v235 = vld [vmem:[%s217 + $0x3c] sm:$0xf]
        %v236 = vld [vmem:[%s217 + $0x40] sm:$0xf]
        %v237 = vld [vmem:[%s217 + $0x48] sm:$0xf]
        %v238 = vld [vmem:[%s217 + $0x4c] sm:$0xf]
        %v239 = vld [vmem:[%s217 + $0x54] sm:$0xf]
        %v240 = vld [vmem:[%s217 + $0x58] sm:$0xf]
        %v241 = vld [vmem:[%s217 + $0x60] sm:$0xf]
        %v242 = vld [vmem:[%s217 + $0x64] sm:$0xf]
        %v243 = vld [vmem:[%s217 + $0x6c] sm:$0xf]
        %v244 = vld [vmem:[%s217 + $0x70] sm:$0xf]
        %v245 = vld [vmem:[%s217 + $0x78] sm:$0xf]
        %v246 = vld [vmem:[%s217 + $0x7c] sm:$0xf]
        %v247 = vld [vmem:[%s217 + $0x84] sm:$0xf]
        %v248 = vld [vmem:[%s217 + $0x88] sm:$0xf]
        %v249 = vld [vmem:[%s217 + $0x90] sm:$0xf]
        %v250 = vld [vmem:[%s217 + $0x94] sm:$0xf]
        %v251 = vld [vmem:[%s217 + $0x9c] sm:$0xf]
        %v252 = vld [vmem:[%s217 + $0xa0] sm:$0xf]
        %v253 = vld [vmem:[%s217 + $0xa8] sm:$0xf]
        %v254 = vld [vmem:[%s217 + $0xac] sm:$0xf]
        %v255 = vld [vmem:[%s217 + $0xb4] sm:$0xf]
        %v256 = vld [vmem:[%s217 + $0xb8] sm:$0xf]
        %v257 = vunpack.c.l.bf16 %v225
        %v258 = vunpack.c.l.bf16 %v226
        %v259 = vunpack.c.l.bf16 %v227
        %v260 = vunpack.c.l.bf16 %v228
        %v261 = vunpack.c.l.bf16 %v229
        %v262 = vunpack.c.l.bf16 %v230
        %v263 = vunpack.c.l.bf16 %v231
        %v264 = vunpack.c.l.bf16 %v232
        %v265 = vunpack.c.l.bf16 %v233
        %v266 = vunpack.c.l.bf16 %v234
        %v267 = vunpack.c.l.bf16 %v235
        %v268 = vunpack.c.l.bf16 %v236
        %v269 = vunpack.c.l.bf16 %v237
        %v270 = vunpack.c.l.bf16 %v238
        %v271 = vunpack.c.l.bf16 %v239
        %v272 = vunpack.c.l.bf16 %v240
        %v273 = vunpack.c.l.bf16 %v241
        %v274 = vunpack.c.l.bf16 %v242
        %v275 = vunpack.c.l.bf16 %v243
        %v276 = vunpack.c.l.bf16 %v244
        %v277 = vunpack.c.l.bf16 %v245
        %v278 = vunpack.c.l.bf16 %v246
        %v279 = vunpack.c.l.bf16 %v247
        %v280 = vunpack.c.l.bf16 %v248
        %v281 = vunpack.c.l.bf16 %v249
        %v282 = vunpack.c.l.bf16 %v250
        %v283 = vunpack.c.l.bf16 %v251
        %v284 = vunpack.c.l.bf16 %v252
        %v285 = vunpack.c.l.bf16 %v253
        %v286 = vunpack.c.l.bf16 %v254
        %v287 = vunpack.c.l.bf16 %v255
        %v288 = vunpack.c.l.bf16 %v256
        %v289 = vld [vmem:[%s221] sm:$0x1]
        %v290 = vlaneseq
        %v291 = vshrl.u32 %v290, 7
        %v292 = vsub.s32 0, %v291
        %v293 = vrot.slane %v289, %v292
        %v294 = vmul.f32 %v257, %v293
        %v295 = vmul.f32 %v258, %v293
        %v296 = vmul.f32 %v259, %v293
        %v297 = vmul.f32 %v260, %v293
        %v298 = vmul.f32 %v261, %v293
        %v299 = vmul.f32 %v262, %v293
        %v300 = vmul.f32 %v263, %v293
        %v301 = vmul.f32 %v264, %v293
        %v302 = vmul.f32 %v265, %v293
        %v303 = vmul.f32 %v266, %v293
        %v304 = vmul.f32 %v267, %v293
        %v305 = vmul.f32 %v268, %v293
        %v306 = vmul.f32 %v269, %v293
        %v307 = vmul.f32 %v270, %v293
        %v308 = vmul.f32 %v271, %v293
        %v309 = vmul.f32 %v272, %v293
        %v310 = vmul.f32 %v273, %v293
        %v311 = vmul.f32 %v274, %v293
        %v312 = vmul.f32 %v275, %v293
        %v313 = vmul.f32 %v276, %v293
        %v314 = vmul.f32 %v277, %v293
        %v315 = vmul.f32 %v278, %v293
        %v316 = vmul.f32 %v279, %v293
        %v317 = vmul.f32 %v280, %v293
        %v318 = vmul.f32 %v281, %v293
        %v319 = vmul.f32 %v282, %v293
        %v320 = vmul.f32 %v283, %v293
        %v321 = vmul.f32 %v284, %v293
        %v322 = vmul.f32 %v285, %v293
        %v323 = vmul.f32 %v286, %v293
        %v324 = vmul.f32 %v287, %v293
        %v325 = vmul.f32 %v288, %v293
        %v326 = vadd.f32 %v294, 0.0
        %v327 = vadd.f32 %v295, 0.0
        %v328 = vadd.f32 %v296, 0.0
        %v329 = vadd.f32 %v297, 0.0
        %v330 = vadd.f32 %v298, 0.0
        %v331 = vadd.f32 %v299, 0.0
        %v332 = vadd.f32 %v300, 0.0
        %v333 = vadd.f32 %v301, 0.0
        %v334 = vadd.f32 %v302, 0.0
        %v335 = vadd.f32 %v303, 0.0
        %v336 = vadd.f32 %v304, 0.0
        %v337 = vadd.f32 %v305, 0.0
        %v338 = vadd.f32 %v306, 0.0
        %v339 = vadd.f32 %v307, 0.0
        %v340 = vadd.f32 %v308, 0.0
        %v341 = vadd.f32 %v309, 0.0
        %v342 = vadd.f32 %v310, 0.0
        %v343 = vadd.f32 %v311, 0.0
        %v344 = vadd.f32 %v312, 0.0
        %v345 = vadd.f32 %v313, 0.0
        %v346 = vadd.f32 %v314, 0.0
        %v347 = vadd.f32 %v315, 0.0
        %v348 = vadd.f32 %v316, 0.0
        %v349 = vadd.f32 %v317, 0.0
        %v350 = vadd.f32 %v318, 0.0
        %v351 = vadd.f32 %v319, 0.0
        %v352 = vadd.f32 %v320, 0.0
        %v353 = vadd.f32 %v321, 0.0
        %v354 = vadd.f32 %v322, 0.0
        %v355 = vadd.f32 %v323, 0.0
        %v356 = vadd.f32 %v324, 0.0
        %v357 = vadd.f32 %v325, 0.0
        %v358 = vld [vmem:[%s217 + $0x8] sm:$0x1]
        %v359 = vld [vmem:[%s217 + $0x14] sm:$0x1]
        %v360 = vld [vmem:[%s217 + $0x20] sm:$0x1]
        %v361 = vld [vmem:[%s217 + $0x2c] sm:$0x1]
        %v362 = vld [vmem:[%s217 + $0x38] sm:$0x1]
        %v363 = vld [vmem:[%s217 + $0x44] sm:$0x1]
        %v364 = vld [vmem:[%s217 + $0x50] sm:$0x1]
        %v365 = vld [vmem:[%s217 + $0x5c] sm:$0x1]
        %v366 = vld [vmem:[%s217 + $0x68] sm:$0x1]
        %v367 = vld [vmem:[%s217 + $0x74] sm:$0x1]
        %v368 = vld [vmem:[%s217 + $0x80] sm:$0x1]
        %v369 = vld [vmem:[%s217 + $0x8c] sm:$0x1]
        %v370 = vld [vmem:[%s217 + $0x98] sm:$0x1]
        %v371 = vld [vmem:[%s217 + $0xa4] sm:$0x1]
        %v372 = vld [vmem:[%s217 + $0xb0] sm:$0x1]
        %v373 = vld [vmem:[%s217 + $0xbc] sm:$0x1]
        %v374 = vunpack.c.l.bf16 %v358
        %v375 = vunpack.c.l.bf16 %v359
        %v376 = vunpack.c.l.bf16 %v360
        %v377 = vunpack.c.l.bf16 %v361
        %v378 = vunpack.c.l.bf16 %v362
        %v379 = vunpack.c.l.bf16 %v363
        %v380 = vunpack.c.l.bf16 %v364
        %v381 = vunpack.c.l.bf16 %v365
        %v382 = vunpack.c.l.bf16 %v366
        %v383 = vunpack.c.l.bf16 %v367
        %v384 = vunpack.c.l.bf16 %v368
        %v385 = vunpack.c.l.bf16 %v369
        %v386 = vunpack.c.l.bf16 %v370
        %v387 = vunpack.c.l.bf16 %v371
        %v388 = vunpack.c.l.bf16 %v372
        %v389 = vunpack.c.l.bf16 %v373
        %v390 = vld [vmem:[%s221 + $0x1] sm:$0x1]
        %v391 = vlaneseq
        %v392 = vshrl.u32 %v391, 7
        %v393 = vsub.s32 0, %v392
        %v394 = vrot.slane %v390, %v393
        %v395 = vmul.f32 %v257, %v394
        %v396 = vmul.f32 %v258, %v394
        %v397 = vmul.f32 %v374, %v394
        %v398 = vmul.f32 %v259, %v394
        %v399 = vmul.f32 %v260, %v394
        %v400 = vmul.f32 %v375, %v394
        %v401 = vmul.f32 %v261, %v394
        %v402 = vmul.f32 %v262, %v394
        %v403 = vmul.f32 %v376, %v394
        %v404 = vmul.f32 %v263, %v394
        %v405 = vmul.f32 %v264, %v394
        %v406 = vmul.f32 %v377, %v394
        %v407 = vmul.f32 %v265, %v394
        %v408 = vmul.f32 %v266, %v394
        %v409 = vmul.f32 %v378, %v394
        %v410 = vmul.f32 %v267, %v394
        %v411 = vmul.f32 %v268, %v394
        %v412 = vmul.f32 %v379, %v394
        %v413 = vmul.f32 %v269, %v394
        %v414 = vmul.f32 %v270, %v394
        %v415 = vmul.f32 %v380, %v394
        %v416 = vmul.f32 %v271, %v394
        %v417 = vmul.f32 %v272, %v394
        %v418 = vmul.f32 %v381, %v394
        %v419 = vmul.f32 %v273, %v394
        %v420 = vmul.f32 %v274, %v394
        %v421 = vmul.f32 %v382, %v394
        %v422 = vmul.f32 %v275, %v394
        %v423 = vmul.f32 %v276, %v394
        %v424 = vmul.f32 %v383, %v394
        %v425 = vmul.f32 %v277, %v394
        %v426 = vmul.f32 %v278, %v394
        %v427 = vmul.f32 %v384, %v394
        %v428 = vmul.f32 %v279, %v394
        %v429 = vmul.f32 %v280, %v394
        %v430 = vmul.f32 %v385, %v394
        %v431 = vmul.f32 %v281, %v394
        %v432 = vmul.f32 %v282, %v394
        %v433 = vmul.f32 %v386, %v394
        %v434 = vmul.f32 %v283, %v394
        %v435 = vmul.f32 %v284, %v394
        %v436 = vmul.f32 %v387, %v394
        %v437 = vmul.f32 %v285, %v394
        %v438 = vmul.f32 %v286, %v394
        %v439 = vmul.f32 %v388, %v394
        %v440 = vmul.f32 %v287, %v394
        %v441 = vmul.f32 %v288, %v394
        %v442 = vmul.f32 %v389, %v394
        %vm491 = vcmask 1046528
        %v492 = vrot.slane %v395, 1
        %v493 = vrot.slane %v396, 1
        %v494 = vsel %vm491, %v492, %v493
        %v495 = vrot.slane %v397, 1
        %v496 = vsel %vm491, %v493, %v495
        %v497 = vrot.slane %v398, 1
        %v498 = vrot.slane %v399, 1
        %v499 = vsel %vm491, %v497, %v498
        %v500 = vrot.slane %v400, 1
        %v501 = vsel %vm491, %v498, %v500
        %v502 = vrot.slane %v401, 1
        %v503 = vrot.slane %v402, 1
        %v504 = vsel %vm491, %v502, %v503
        %v505 = vrot.slane %v403, 1
        %v506 = vsel %vm491, %v503, %v505
        %v507 = vrot.slane %v404, 1
        %v508 = vrot.slane %v405, 1
        %v509 = vsel %vm491, %v507, %v508
        %v510 = vrot.slane %v406, 1
        %v511 = vsel %vm491, %v508, %v510
        %v512 = vrot.slane %v407, 1
        %v513 = vrot.slane %v408, 1
        %v514 = vsel %vm491, %v512, %v513
        %v515 = vrot.slane %v409, 1
        %v516 = vsel %vm491, %v513, %v515
        %v517 = vrot.slane %v410, 1
        %v518 = vrot.slane %v411, 1
        %v519 = vsel %vm491, %v517, %v518
        %v520 = vrot.slane %v412, 1
        %v521 = vsel %vm491, %v518, %v520
        %v522 = vrot.slane %v413, 1
        %v523 = vrot.slane %v414, 1
        %v524 = vsel %vm491, %v522, %v523
        %v525 = vrot.slane %v415, 1
        %v526 = vsel %vm491, %v523, %v525
        %v527 = vrot.slane %v416, 1
        %v528 = vrot.slane %v417, 1
        %v529 = vsel %vm491, %v527, %v528
        %v530 = vrot.slane %v418, 1
        %v531 = vsel %vm491, %v528, %v530
        %v532 = vrot.slane %v419, 1
        %v533 = vrot.slane %v420, 1
        %v534 = vsel %vm491, %v532, %v533
        %v535 = vrot.slane %v421, 1
        %v536 = vsel %vm491, %v533, %v535
        %v537 = vrot.slane %v422, 1
        %v538 = vrot.slane %v423, 1
        %v539 = vsel %vm491, %v537, %v538
        %v540 = vrot.slane %v424, 1
        %v541 = vsel %vm491, %v538, %v540
        %v542 = vrot.slane %v425, 1
        %v543 = vrot.slane %v426, 1
        %v544 = vsel %vm491, %v542, %v543
        %v545 = vrot.slane %v427, 1
        %v546 = vsel %vm491, %v543, %v545
        %v547 = vrot.slane %v428, 1
        %v548 = vrot.slane %v429, 1
        %v549 = vsel %vm491, %v547, %v548
        %v550 = vrot.slane %v430, 1
        %v551 = vsel %vm491, %v548, %v550
        %v552 = vrot.slane %v431, 1
        %v553 = vrot.slane %v432, 1
        %v554 = vsel %vm491, %v552, %v553
        %v555 = vrot.slane %v433, 1
        %v556 = vsel %vm491, %v553, %v555
        %v557 = vrot.slane %v434, 1
        %v558 = vrot.slane %v435, 1
        %v559 = vsel %vm491, %v557, %v558
        %v560 = vrot.slane %v436, 1
        %v561 = vsel %vm491, %v558, %v560
        %v562 = vrot.slane %v437, 1
        %v563 = vrot.slane %v438, 1
        %v564 = vsel %vm491, %v562, %v563
        %v565 = vrot.slane %v439, 1
        %v566 = vsel %vm491, %v563, %v565
        %v567 = vrot.slane %v440, 1
        %v568 = vrot.slane %v441, 1
        %v569 = vsel %vm491, %v567, %v568
        %v570 = vrot.slane %v442, 1
        %v571 = vsel %vm491, %v568, %v570
        %v604 = vadd.f32 %v326, %v494
        %v605 = vadd.f32 %v327, %v496
        %v606 = vadd.f32 %v328, %v499
        %v607 = vadd.f32 %v329, %v501
        %v608 = vadd.f32 %v330, %v504
        %v609 = vadd.f32 %v331, %v506
        %v610 = vadd.f32 %v332, %v509
        %v611 = vadd.f32 %v333, %v511
        %v612 = vadd.f32 %v334, %v514
        %v613 = vadd.f32 %v335, %v516
        %v614 = vadd.f32 %v336, %v519
        %v615 = vadd.f32 %v337, %v521
        %v616 = vadd.f32 %v338, %v524
        %v617 = vadd.f32 %v339, %v526
        %v618 = vadd.f32 %v340, %v529
        %v619 = vadd.f32 %v341, %v531
        %v620 = vadd.f32 %v342, %v534
        %v621 = vadd.f32 %v343, %v536
        %v622 = vadd.f32 %v344, %v539
        %v623 = vadd.f32 %v345, %v541
        %v624 = vadd.f32 %v346, %v544
        %v625 = vadd.f32 %v347, %v546
        %v626 = vadd.f32 %v348, %v549
        %v627 = vadd.f32 %v349, %v551
        %v628 = vadd.f32 %v350, %v554
        %v629 = vadd.f32 %v351, %v556
        %v630 = vadd.f32 %v352, %v559
        %v631 = vadd.f32 %v353, %v561
        %v632 = vadd.f32 %v354, %v564
        %v633 = vadd.f32 %v355, %v566
        %v634 = vadd.f32 %v356, %v569
        %v635 = vadd.f32 %v357, %v571
        %v636 = vld [vmem:[%s217] sm:$0xe]
        %v637 = vld [vmem:[%s217 + $0xc] sm:$0xe]
        %v638 = vld [vmem:[%s217 + $0x18] sm:$0xe]
        %v639 = vld [vmem:[%s217 + $0x24] sm:$0xe]
        %v640 = vld [vmem:[%s217 + $0x30] sm:$0xe]
        %v641 = vld [vmem:[%s217 + $0x3c] sm:$0xe]
        %v642 = vld [vmem:[%s217 + $0x48] sm:$0xe]
        %v643 = vld [vmem:[%s217 + $0x54] sm:$0xe]
        %v644 = vld [vmem:[%s217 + $0x60] sm:$0xe]
        %v645 = vld [vmem:[%s217 + $0x6c] sm:$0xe]
        %v646 = vld [vmem:[%s217 + $0x78] sm:$0xe]
        %v647 = vld [vmem:[%s217 + $0x84] sm:$0xe]
        %v648 = vld [vmem:[%s217 + $0x90] sm:$0xe]
        %v649 = vld [vmem:[%s217 + $0x9c] sm:$0xe]
        %v650 = vld [vmem:[%s217 + $0xa8] sm:$0xe]
        %v651 = vld [vmem:[%s217 + $0xb4] sm:$0xe]
        %v652 = vunpack.c.l.bf16 %v636
        %v653 = vunpack.c.l.bf16 %v637
        %v654 = vunpack.c.l.bf16 %v638
        %v655 = vunpack.c.l.bf16 %v639
        %v656 = vunpack.c.l.bf16 %v640
        %v657 = vunpack.c.l.bf16 %v641
        %v658 = vunpack.c.l.bf16 %v642
        %v659 = vunpack.c.l.bf16 %v643
        %v660 = vunpack.c.l.bf16 %v644
        %v661 = vunpack.c.l.bf16 %v645
        %v662 = vunpack.c.l.bf16 %v646
        %v663 = vunpack.c.l.bf16 %v647
        %v664 = vunpack.c.l.bf16 %v648
        %v665 = vunpack.c.l.bf16 %v649
        %v666 = vunpack.c.l.bf16 %v650
        %v667 = vunpack.c.l.bf16 %v651
        %v668 = vld [vmem:[%s221 + $0x2] sm:$0x1]
        %v669 = vlaneseq
        %v670 = vshrl.u32 %v669, 7
        %v671 = vsub.s32 0, %v670
        %v672 = vrot.slane %v668, %v671
        %v673 = vmul.f32 %v652, %v672
        %v674 = vmul.f32 %v258, %v672
        %v675 = vmul.f32 %v374, %v672
        %v676 = vmul.f32 %v653, %v672
        %v677 = vmul.f32 %v260, %v672
        %v678 = vmul.f32 %v375, %v672
        %v679 = vmul.f32 %v654, %v672
        %v680 = vmul.f32 %v262, %v672
        %v681 = vmul.f32 %v376, %v672
        %v682 = vmul.f32 %v655, %v672
        %v683 = vmul.f32 %v264, %v672
        %v684 = vmul.f32 %v377, %v672
        %v685 = vmul.f32 %v656, %v672
        %v686 = vmul.f32 %v266, %v672
        %v687 = vmul.f32 %v378, %v672
        %v688 = vmul.f32 %v657, %v672
        %v689 = vmul.f32 %v268, %v672
        %v690 = vmul.f32 %v379, %v672
        %v691 = vmul.f32 %v658, %v672
        %v692 = vmul.f32 %v270, %v672
        %v693 = vmul.f32 %v380, %v672
        %v694 = vmul.f32 %v659, %v672
        %v695 = vmul.f32 %v272, %v672
        %v696 = vmul.f32 %v381, %v672
        %v697 = vmul.f32 %v660, %v672
        %v698 = vmul.f32 %v274, %v672
        %v699 = vmul.f32 %v382, %v672
        %v700 = vmul.f32 %v661, %v672
        %v701 = vmul.f32 %v276, %v672
        %v702 = vmul.f32 %v383, %v672
        %v703 = vmul.f32 %v662, %v672
        %v704 = vmul.f32 %v278, %v672
        %v705 = vmul.f32 %v384, %v672
        %v706 = vmul.f32 %v663, %v672
        %v707 = vmul.f32 %v280, %v672
        %v708 = vmul.f32 %v385, %v672
        %v709 = vmul.f32 %v664, %v672
        %v710 = vmul.f32 %v282, %v672
        %v711 = vmul.f32 %v386, %v672
        %v712 = vmul.f32 %v665, %v672
        %v713 = vmul.f32 %v284, %v672
        %v714 = vmul.f32 %v387, %v672
        %v715 = vmul.f32 %v666, %v672
        %v716 = vmul.f32 %v286, %v672
        %v717 = vmul.f32 %v388, %v672
        %v718 = vmul.f32 %v667, %v672
        %v719 = vmul.f32 %v288, %v672
        %v720 = vmul.f32 %v389, %v672
        %vm769 = vcmask 1045504
        %v770 = vrot.slane %v673, 2
        %v771 = vrot.slane %v674, 2
        %v772 = vsel %vm769, %v770, %v771
        %v773 = vrot.slane %v675, 2
        %v774 = vsel %vm769, %v771, %v773
        %v775 = vrot.slane %v676, 2
        %v776 = vrot.slane %v677, 2
        %v777 = vsel %vm769, %v775, %v776
        %v778 = vrot.slane %v678, 2
        %v779 = vsel %vm769, %v776, %v778
        %v780 = vrot.slane %v679, 2
        %v781 = vrot.slane %v680, 2
        %v782 = vsel %vm769, %v780, %v781
        %v783 = vrot.slane %v681, 2
        %v784 = vsel %vm769, %v781, %v783
        %v785 = vrot.slane %v682, 2
        %v786 = vrot.slane %v683, 2
        %v787 = vsel %vm769, %v785, %v786
        %v788 = vrot.slane %v684, 2
        %v789 = vsel %vm769, %v786, %v788
        %v790 = vrot.slane %v685, 2
        %v791 = vrot.slane %v686, 2
        %v792 = vsel %vm769, %v790, %v791
        %v793 = vrot.slane %v687, 2
        %v794 = vsel %vm769, %v791, %v793
        %v795 = vrot.slane %v688, 2
        %v796 = vrot.slane %v689, 2
        %v797 = vsel %vm769, %v795, %v796
        %v798 = vrot.slane %v690, 2
        %v799 = vsel %vm769, %v796, %v798
        %v800 = vrot.slane %v691, 2
        %v801 = vrot.slane %v692, 2
        %v802 = vsel %vm769, %v800, %v801
        %v803 = vrot.slane %v693, 2
        %v804 = vsel %vm769, %v801, %v803
        %v805 = vrot.slane %v694, 2
        %v806 = vrot.slane %v695, 2
        %v807 = vsel %vm769, %v805, %v806
        %v808 = vrot.slane %v696, 2
        %v809 = vsel %vm769, %v806, %v808
        %v810 = vrot.slane %v697, 2
        %v811 = vrot.slane %v698, 2
        %v812 = vsel %vm769, %v810, %v811
        %v813 = vrot.slane %v699, 2
        %v814 = vsel %vm769, %v811, %v813
        %v815 = vrot.slane %v700, 2
        %v816 = vrot.slane %v701, 2
        %v817 = vsel %vm769, %v815, %v816
        %v818 = vrot.slane %v702, 2
        %v819 = vsel %vm769, %v816, %v818
        %v820 = vrot.slane %v703, 2
        %v821 = vrot.slane %v704, 2
        %v822 = vsel %vm769, %v820, %v821
        %v823 = vrot.slane %v705, 2
        %v824 = vsel %vm769, %v821, %v823
        %v825 = vrot.slane %v706, 2
        %v826 = vrot.slane %v707, 2
        %v827 = vsel %vm769, %v825, %v826
        %v828 = vrot.slane %v708, 2
        %v829 = vsel %vm769, %v826, %v828
        %v830 = vrot.slane %v709, 2
        %v831 = vrot.slane %v710, 2
        %v832 = vsel %vm769, %v830, %v831
        %v833 = vrot.slane %v711, 2
        %v834 = vsel %vm769, %v831, %v833
        %v835 = vrot.slane %v712, 2
        %v836 = vrot.slane %v713, 2
        %v837 = vsel %vm769, %v835, %v836
        %v838 = vrot.slane %v714, 2
        %v839 = vsel %vm769, %v836, %v838
        %v840 = vrot.slane %v715, 2
        %v841 = vrot.slane %v716, 2
        %v842 = vsel %vm769, %v840, %v841
        %v843 = vrot.slane %v717, 2
        %v844 = vsel %vm769, %v841, %v843
        %v845 = vrot.slane %v718, 2
        %v846 = vrot.slane %v719, 2
        %v847 = vsel %vm769, %v845, %v846
        %v848 = vrot.slane %v720, 2
        %v849 = vsel %vm769, %v846, %v848
        %v882 = vadd.f32 %v604, %v772
        %v883 = vadd.f32 %v605, %v774
        %v884 = vadd.f32 %v606, %v777
        %v885 = vadd.f32 %v607, %v779
        %v886 = vadd.f32 %v608, %v782
        %v887 = vadd.f32 %v609, %v784
        %v888 = vadd.f32 %v610, %v787
        %v889 = vadd.f32 %v611, %v789
        %v890 = vadd.f32 %v612, %v792
        %v891 = vadd.f32 %v613, %v794
        %v892 = vadd.f32 %v614, %v797
        %v893 = vadd.f32 %v615, %v799
        %v894 = vadd.f32 %v616, %v802
        %v895 = vadd.f32 %v617, %v804
        %v896 = vadd.f32 %v618, %v807
        %v897 = vadd.f32 %v619, %v809
        %v898 = vadd.f32 %v620, %v812
        %v899 = vadd.f32 %v621, %v814
        %v900 = vadd.f32 %v622, %v817
        %v901 = vadd.f32 %v623, %v819
        %v902 = vadd.f32 %v624, %v822
        %v903 = vadd.f32 %v625, %v824
        %v904 = vadd.f32 %v626, %v827
        %v905 = vadd.f32 %v627, %v829
        %v906 = vadd.f32 %v628, %v832
        %v907 = vadd.f32 %v629, %v834
        %v908 = vadd.f32 %v630, %v837
        %v909 = vadd.f32 %v631, %v839
        %v910 = vadd.f32 %v632, %v842
        %v911 = vadd.f32 %v633, %v844
        %v912 = vadd.f32 %v634, %v847
        %v913 = vadd.f32 %v635, %v849
        %s914 = scalar_lea.vmem %s217, 12
        %v915 = vld [vmem:[%s914] sm:$0xf]
        %v916 = vld [vmem:[%s914 + $0x4] sm:$0xf]
        %v917 = vld [vmem:[%s914 + $0xc] sm:$0xf]
        %v918 = vld [vmem:[%s914 + $0x10] sm:$0xf]
        %v919 = vld [vmem:[%s914 + $0x18] sm:$0xf]
        %v920 = vld [vmem:[%s914 + $0x1c] sm:$0xf]
        %v921 = vld [vmem:[%s914 + $0x24] sm:$0xf]
        %v922 = vld [vmem:[%s914 + $0x28] sm:$0xf]
        %v923 = vld [vmem:[%s914 + $0x30] sm:$0xf]
        %v924 = vld [vmem:[%s914 + $0x34] sm:$0xf]
        %v925 = vld [vmem:[%s914 + $0x3c] sm:$0xf]
        %v926 = vld [vmem:[%s914 + $0x40] sm:$0xf]
        %v927 = vld [vmem:[%s914 + $0x48] sm:$0xf]
        %v928 = vld [vmem:[%s914 + $0x4c] sm:$0xf]
        %v929 = vld [vmem:[%s914 + $0x54] sm:$0xf]
        %v930 = vld [vmem:[%s914 + $0x58] sm:$0xf]
        %v931 = vld [vmem:[%s914 + $0x60] sm:$0xf]
        %v932 = vld [vmem:[%s914 + $0x64] sm:$0xf]
        %v933 = vld [vmem:[%s914 + $0x6c] sm:$0xf]
        %v934 = vld [vmem:[%s914 + $0x70] sm:$0xf]
        %v935 = vld [vmem:[%s914 + $0x78] sm:$0xf]
        %v936 = vld [vmem:[%s914 + $0x7c] sm:$0xf]
        %v937 = vld [vmem:[%s914 + $0x84] sm:$0xf]
        %v938 = vld [vmem:[%s914 + $0x88] sm:$0xf]
        %v939 = vld [vmem:[%s914 + $0x90] sm:$0xf]
        %v940 = vld [vmem:[%s914 + $0x94] sm:$0xf]
        %v941 = vld [vmem:[%s914 + $0x9c] sm:$0xf]
        %v942 = vld [vmem:[%s914 + $0xa0] sm:$0xf]
        %v943 = vld [vmem:[%s914 + $0xa8] sm:$0xf]
        %v944 = vld [vmem:[%s914 + $0xac] sm:$0xf]
        %v945 = vld [vmem:[%s914 + $0xb4] sm:$0xf]
        %v946 = vld [vmem:[%s914 + $0xb8] sm:$0xf]
        %v947 = vunpack.c.l.bf16 %v915
        %v948 = vunpack.c.l.bf16 %v916
        %v949 = vunpack.c.l.bf16 %v917
        %v950 = vunpack.c.l.bf16 %v918
        %v951 = vunpack.c.l.bf16 %v919
        %v952 = vunpack.c.l.bf16 %v920
        %v953 = vunpack.c.l.bf16 %v921
        %v954 = vunpack.c.l.bf16 %v922
        %v955 = vunpack.c.l.bf16 %v923
        %v956 = vunpack.c.l.bf16 %v924
        %v957 = vunpack.c.l.bf16 %v925
        %v958 = vunpack.c.l.bf16 %v926
        %v959 = vunpack.c.l.bf16 %v927
        %v960 = vunpack.c.l.bf16 %v928
        %v961 = vunpack.c.l.bf16 %v929
        %v962 = vunpack.c.l.bf16 %v930
        %v963 = vunpack.c.l.bf16 %v931
        %v964 = vunpack.c.l.bf16 %v932
        %v965 = vunpack.c.l.bf16 %v933
        %v966 = vunpack.c.l.bf16 %v934
        %v967 = vunpack.c.l.bf16 %v935
        %v968 = vunpack.c.l.bf16 %v936
        %v969 = vunpack.c.l.bf16 %v937
        %v970 = vunpack.c.l.bf16 %v938
        %v971 = vunpack.c.l.bf16 %v939
        %v972 = vunpack.c.l.bf16 %v940
        %v973 = vunpack.c.l.bf16 %v941
        %v974 = vunpack.c.l.bf16 %v942
        %v975 = vunpack.c.l.bf16 %v943
        %v976 = vunpack.c.l.bf16 %v944
        %v977 = vunpack.c.l.bf16 %v945
        %v978 = vunpack.c.l.bf16 %v946
        %v979 = vld [vmem:[%s221 + $0x3] sm:$0x1]
        %v980 = vlaneseq
        %v981 = vshrl.u32 %v980, 7
        %v982 = vsub.s32 0, %v981
        %v983 = vrot.slane %v979, %v982
        %v984 = vmul.f32 %v947, %v983
        %v985 = vmul.f32 %v948, %v983
        %v986 = vmul.f32 %v949, %v983
        %v987 = vmul.f32 %v950, %v983
        %v988 = vmul.f32 %v951, %v983
        %v989 = vmul.f32 %v952, %v983
        %v990 = vmul.f32 %v953, %v983
        %v991 = vmul.f32 %v954, %v983
        %v992 = vmul.f32 %v955, %v983
        %v993 = vmul.f32 %v956, %v983
        %v994 = vmul.f32 %v957, %v983
        %v995 = vmul.f32 %v958, %v983
        %v996 = vmul.f32 %v959, %v983
        %v997 = vmul.f32 %v960, %v983
        %v998 = vmul.f32 %v961, %v983
        %v999 = vmul.f32 %v962, %v983
        %v1000 = vmul.f32 %v963, %v983
        %v1001 = vmul.f32 %v964, %v983
        %v1002 = vmul.f32 %v965, %v983
        %v1003 = vmul.f32 %v966, %v983
        %v1004 = vmul.f32 %v967, %v983
        %v1005 = vmul.f32 %v968, %v983
        %v1006 = vmul.f32 %v969, %v983
        %v1007 = vmul.f32 %v970, %v983
        %v1008 = vmul.f32 %v971, %v983
        %v1009 = vmul.f32 %v972, %v983
        %v1010 = vmul.f32 %v973, %v983
        %v1011 = vmul.f32 %v974, %v983
        %v1012 = vmul.f32 %v975, %v983
        %v1013 = vmul.f32 %v976, %v983
        %v1014 = vmul.f32 %v977, %v983
        %v1015 = vmul.f32 %v978, %v983
        %v1016 = vadd.f32 %v882, %v984
        %v1017 = vadd.f32 %v883, %v985
        %v1018 = vadd.f32 %v884, %v986
        %v1019 = vadd.f32 %v885, %v987
        %v1020 = vadd.f32 %v886, %v988
        %v1021 = vadd.f32 %v887, %v989
        %v1022 = vadd.f32 %v888, %v990
        %v1023 = vadd.f32 %v889, %v991
        %v1024 = vadd.f32 %v890, %v992
        %v1025 = vadd.f32 %v891, %v993
        %v1026 = vadd.f32 %v892, %v994
        %v1027 = vadd.f32 %v893, %v995
        %v1028 = vadd.f32 %v894, %v996
        %v1029 = vadd.f32 %v895, %v997
        %v1030 = vadd.f32 %v896, %v998
        %v1031 = vadd.f32 %v897, %v999
        %v1032 = vadd.f32 %v898, %v1000
        %v1033 = vadd.f32 %v899, %v1001
        %v1034 = vadd.f32 %v900, %v1002
        %v1035 = vadd.f32 %v901, %v1003
        %v1036 = vadd.f32 %v902, %v1004
        %v1037 = vadd.f32 %v903, %v1005
        %v1038 = vadd.f32 %v904, %v1006
        %v1039 = vadd.f32 %v905, %v1007
        %v1040 = vadd.f32 %v906, %v1008
        %v1041 = vadd.f32 %v907, %v1009
        %v1042 = vadd.f32 %v908, %v1010
        %v1043 = vadd.f32 %v909, %v1011
        %v1044 = vadd.f32 %v910, %v1012
        %v1045 = vadd.f32 %v911, %v1013
        %v1046 = vadd.f32 %v912, %v1014
        %v1047 = vadd.f32 %v913, %v1015
        %v1048 = vld [vmem:[%s914 + $0x8] sm:$0x1]
        %v1049 = vld [vmem:[%s914 + $0x14] sm:$0x1]
        %v1050 = vld [vmem:[%s914 + $0x20] sm:$0x1]
        %v1051 = vld [vmem:[%s914 + $0x2c] sm:$0x1]
        %v1052 = vld [vmem:[%s914 + $0x38] sm:$0x1]
        %v1053 = vld [vmem:[%s914 + $0x44] sm:$0x1]
        %v1054 = vld [vmem:[%s914 + $0x50] sm:$0x1]
        %v1055 = vld [vmem:[%s914 + $0x5c] sm:$0x1]
        %v1056 = vld [vmem:[%s914 + $0x68] sm:$0x1]
        %v1057 = vld [vmem:[%s914 + $0x74] sm:$0x1]
        %v1058 = vld [vmem:[%s914 + $0x80] sm:$0x1]
        %v1059 = vld [vmem:[%s914 + $0x8c] sm:$0x1]
        %v1060 = vld [vmem:[%s914 + $0x98] sm:$0x1]
        %v1061 = vld [vmem:[%s914 + $0xa4] sm:$0x1]
        %v1062 = vld [vmem:[%s914 + $0xb0] sm:$0x1]
        %v1063 = vld [vmem:[%s914 + $0xbc] sm:$0x1]
        %v1064 = vunpack.c.l.bf16 %v1048
        %v1065 = vunpack.c.l.bf16 %v1049
        %v1066 = vunpack.c.l.bf16 %v1050
        %v1067 = vunpack.c.l.bf16 %v1051
        %v1068 = vunpack.c.l.bf16 %v1052
        %v1069 = vunpack.c.l.bf16 %v1053
        %v1070 = vunpack.c.l.bf16 %v1054
        %v1071 = vunpack.c.l.bf16 %v1055
        %v1072 = vunpack.c.l.bf16 %v1056
        %v1073 = vunpack.c.l.bf16 %v1057
        %v1074 = vunpack.c.l.bf16 %v1058
        %v1075 = vunpack.c.l.bf16 %v1059
        %v1076 = vunpack.c.l.bf16 %v1060
        %v1077 = vunpack.c.l.bf16 %v1061
        %v1078 = vunpack.c.l.bf16 %v1062
        %v1079 = vunpack.c.l.bf16 %v1063
        %v1080 = vld [vmem:[%s221 + $0x4] sm:$0x1]
        %v1081 = vlaneseq
        %v1082 = vshrl.u32 %v1081, 7
        %v1083 = vsub.s32 0, %v1082
        %v1084 = vrot.slane %v1080, %v1083
        %v1085 = vmul.f32 %v947, %v1084
        %v1086 = vmul.f32 %v948, %v1084
        %v1087 = vmul.f32 %v1064, %v1084
        %v1088 = vmul.f32 %v949, %v1084
        %v1089 = vmul.f32 %v950, %v1084
        %v1090 = vmul.f32 %v1065, %v1084
        %v1091 = vmul.f32 %v951, %v1084
        %v1092 = vmul.f32 %v952, %v1084
        %v1093 = vmul.f32 %v1066, %v1084
        %v1094 = vmul.f32 %v953, %v1084
        %v1095 = vmul.f32 %v954, %v1084
        %v1096 = vmul.f32 %v1067, %v1084
        %v1097 = vmul.f32 %v955, %v1084
        %v1098 = vmul.f32 %v956, %v1084
        %v1099 = vmul.f32 %v1068, %v1084
        %v1100 = vmul.f32 %v957, %v1084
        %v1101 = vmul.f32 %v958, %v1084
        %v1102 = vmul.f32 %v1069, %v1084
        %v1103 = vmul.f32 %v959, %v1084
        %v1104 = vmul.f32 %v960, %v1084
        %v1105 = vmul.f32 %v1070, %v1084
        %v1106 = vmul.f32 %v961, %v1084
        %v1107 = vmul.f32 %v962, %v1084
        %v1108 = vmul.f32 %v1071, %v1084
        %v1109 = vmul.f32 %v963, %v1084
        %v1110 = vmul.f32 %v964, %v1084
        %v1111 = vmul.f32 %v1072, %v1084
        %v1112 = vmul.f32 %v965, %v1084
        %v1113 = vmul.f32 %v966, %v1084
        %v1114 = vmul.f32 %v1073, %v1084
        %v1115 = vmul.f32 %v967, %v1084
        %v1116 = vmul.f32 %v968, %v1084
        %v1117 = vmul.f32 %v1074, %v1084
        %v1118 = vmul.f32 %v969, %v1084
        %v1119 = vmul.f32 %v970, %v1084
        %v1120 = vmul.f32 %v1075, %v1084
        %v1121 = vmul.f32 %v971, %v1084
        %v1122 = vmul.f32 %v972, %v1084
        %v1123 = vmul.f32 %v1076, %v1084
        %v1124 = vmul.f32 %v973, %v1084
        %v1125 = vmul.f32 %v974, %v1084
        %v1126 = vmul.f32 %v1077, %v1084
        %v1127 = vmul.f32 %v975, %v1084
        %v1128 = vmul.f32 %v976, %v1084
        %v1129 = vmul.f32 %v1078, %v1084
        %v1130 = vmul.f32 %v977, %v1084
        %v1131 = vmul.f32 %v978, %v1084
        %v1132 = vmul.f32 %v1079, %v1084
        %v1181 = vrot.slane %v1085, 1
        %v1182 = vrot.slane %v1086, 1
        %v1183 = vsel %vm491, %v1181, %v1182
        %v1184 = vrot.slane %v1087, 1
        %v1185 = vsel %vm491, %v1182, %v1184
        %v1186 = vrot.slane %v1088, 1
        %v1187 = vrot.slane %v1089, 1
        %v1188 = vsel %vm491, %v1186, %v1187
        %v1189 = vrot.slane %v1090, 1
        %v1190 = vsel %vm491, %v1187, %v1189
        %v1191 = vrot.slane %v1091, 1
        %v1192 = vrot.slane %v1092, 1
        %v1193 = vsel %vm491, %v1191, %v1192
        %v1194 = vrot.slane %v1093, 1
        %v1195 = vsel %vm491, %v1192, %v1194
        %v1196 = vrot.slane %v1094, 1
        %v1197 = vrot.slane %v1095, 1
        %v1198 = vsel %vm491, %v1196, %v1197
        %v1199 = vrot.slane %v1096, 1
        %v1200 = vsel %vm491, %v1197, %v1199
        %v1201 = vrot.slane %v1097, 1
        %v1202 = vrot.slane %v1098, 1
        %v1203 = vsel %vm491, %v1201, %v1202
        %v1204 = vrot.slane %v1099, 1
        %v1205 = vsel %vm491, %v1202, %v1204
        %v1206 = vrot.slane %v1100, 1
        %v1207 = vrot.slane %v1101, 1
        %v1208 = vsel %vm491, %v1206, %v1207
        %v1209 = vrot.slane %v1102, 1
        %v1210 = vsel %vm491, %v1207, %v1209
        %v1211 = vrot.slane %v1103, 1
        %v1212 = vrot.slane %v1104, 1
        %v1213 = vsel %vm491, %v1211, %v1212
        %v1214 = vrot.slane %v1105, 1
        %v1215 = vsel %vm491, %v1212, %v1214
        %v1216 = vrot.slane %v1106, 1
        %v1217 = vrot.slane %v1107, 1
        %v1218 = vsel %vm491, %v1216, %v1217
        %v1219 = vrot.slane %v1108, 1
        %v1220 = vsel %vm491, %v1217, %v1219
        %v1221 = vrot.slane %v1109, 1
        %v1222 = vrot.slane %v1110, 1
        %v1223 = vsel %vm491, %v1221, %v1222
        %v1224 = vrot.slane %v1111, 1
        %v1225 = vsel %vm491, %v1222, %v1224
        %v1226 = vrot.slane %v1112, 1
        %v1227 = vrot.slane %v1113, 1
        %v1228 = vsel %vm491, %v1226, %v1227
        %v1229 = vrot.slane %v1114, 1
        %v1230 = vsel %vm491, %v1227, %v1229
        %v1231 = vrot.slane %v1115, 1
        %v1232 = vrot.slane %v1116, 1
        %v1233 = vsel %vm491, %v1231, %v1232
        %v1234 = vrot.slane %v1117, 1
        %v1235 = vsel %vm491, %v1232, %v1234
        %v1236 = vrot.slane %v1118, 1
        %v1237 = vrot.slane %v1119, 1
        %v1238 = vsel %vm491, %v1236, %v1237
        %v1239 = vrot.slane %v1120, 1
        %v1240 = vsel %vm491, %v1237, %v1239
        %v1241 = vrot.slane %v1121, 1
        %v1242 = vrot.slane %v1122, 1
        %v1243 = vsel %vm491, %v1241, %v1242
        %v1244 = vrot.slane %v1123, 1
        %v1245 = vsel %vm491, %v1242, %v1244
        %v1246 = vrot.slane %v1124, 1
        %v1247 = vrot.slane %v1125, 1
        %v1248 = vsel %vm491, %v1246, %v1247
        %v1249 = vrot.slane %v1126, 1
        %v1250 = vsel %vm491, %v1247, %v1249
        %v1251 = vrot.slane %v1127, 1
        %v1252 = vrot.slane %v1128, 1
        %v1253 = vsel %vm491, %v1251, %v1252
        %v1254 = vrot.slane %v1129, 1
        %v1255 = vsel %vm491, %v1252, %v1254
        %v1256 = vrot.slane %v1130, 1
        %v1257 = vrot.slane %v1131, 1
        %v1258 = vsel %vm491, %v1256, %v1257
        %v1259 = vrot.slane %v1132, 1
        %v1260 = vsel %vm491, %v1257, %v1259
        %v1293 = vadd.f32 %v1016, %v1183
        %v1294 = vadd.f32 %v1017, %v1185
        %v1295 = vadd.f32 %v1018, %v1188
        %v1296 = vadd.f32 %v1019, %v1190
        %v1297 = vadd.f32 %v1020, %v1193
        %v1298 = vadd.f32 %v1021, %v1195
        %v1299 = vadd.f32 %v1022, %v1198
        %v1300 = vadd.f32 %v1023, %v1200
        %v1301 = vadd.f32 %v1024, %v1203
        %v1302 = vadd.f32 %v1025, %v1205
        %v1303 = vadd.f32 %v1026, %v1208
        %v1304 = vadd.f32 %v1027, %v1210
        %v1305 = vadd.f32 %v1028, %v1213
        %v1306 = vadd.f32 %v1029, %v1215
        %v1307 = vadd.f32 %v1030, %v1218
        %v1308 = vadd.f32 %v1031, %v1220
        %v1309 = vadd.f32 %v1032, %v1223
        %v1310 = vadd.f32 %v1033, %v1225
        %v1311 = vadd.f32 %v1034, %v1228
        %v1312 = vadd.f32 %v1035, %v1230
        %v1313 = vadd.f32 %v1036, %v1233
        %v1314 = vadd.f32 %v1037, %v1235
        %v1315 = vadd.f32 %v1038, %v1238
        %v1316 = vadd.f32 %v1039, %v1240
        %v1317 = vadd.f32 %v1040, %v1243
        %v1318 = vadd.f32 %v1041, %v1245
        %v1319 = vadd.f32 %v1042, %v1248
        %v1320 = vadd.f32 %v1043, %v1250
        %v1321 = vadd.f32 %v1044, %v1253
        %v1322 = vadd.f32 %v1045, %v1255
        %v1323 = vadd.f32 %v1046, %v1258
        %v1324 = vadd.f32 %v1047, %v1260
        %v1325 = vld [vmem:[%s914] sm:$0xe]
        %v1326 = vld [vmem:[%s914 + $0xc] sm:$0xe]
        %v1327 = vld [vmem:[%s914 + $0x18] sm:$0xe]
        %v1328 = vld [vmem:[%s914 + $0x24] sm:$0xe]
        %v1329 = vld [vmem:[%s914 + $0x30] sm:$0xe]
        %v1330 = vld [vmem:[%s914 + $0x3c] sm:$0xe]
        %v1331 = vld [vmem:[%s914 + $0x48] sm:$0xe]
        %v1332 = vld [vmem:[%s914 + $0x54] sm:$0xe]
        %v1333 = vld [vmem:[%s914 + $0x60] sm:$0xe]
        %v1334 = vld [vmem:[%s914 + $0x6c] sm:$0xe]
        %v1335 = vld [vmem:[%s914 + $0x78] sm:$0xe]
        %v1336 = vld [vmem:[%s914 + $0x84] sm:$0xe]
        %v1337 = vld [vmem:[%s914 + $0x90] sm:$0xe]
        %v1338 = vld [vmem:[%s914 + $0x9c] sm:$0xe]
        %v1339 = vld [vmem:[%s914 + $0xa8] sm:$0xe]
        %v1340 = vld [vmem:[%s914 + $0xb4] sm:$0xe]
        %v1341 = vunpack.c.l.bf16 %v1325
        %v1342 = vunpack.c.l.bf16 %v1326
        %v1343 = vunpack.c.l.bf16 %v1327
        %v1344 = vunpack.c.l.bf16 %v1328
        %v1345 = vunpack.c.l.bf16 %v1329
        %v1346 = vunpack.c.l.bf16 %v1330
        %v1347 = vunpack.c.l.bf16 %v1331
        %v1348 = vunpack.c.l.bf16 %v1332
        %v1349 = vunpack.c.l.bf16 %v1333
        %v1350 = vunpack.c.l.bf16 %v1334
        %v1351 = vunpack.c.l.bf16 %v1335
        %v1352 = vunpack.c.l.bf16 %v1336
        %v1353 = vunpack.c.l.bf16 %v1337
        %v1354 = vunpack.c.l.bf16 %v1338
        %v1355 = vunpack.c.l.bf16 %v1339
        %v1356 = vunpack.c.l.bf16 %v1340
        %v1357 = vld [vmem:[%s221 + $0x5] sm:$0x1]
        %v1358 = vlaneseq
        %v1359 = vshrl.u32 %v1358, 7
        %v1360 = vsub.s32 0, %v1359
        %v1361 = vrot.slane %v1357, %v1360
        %v1362 = vmul.f32 %v1341, %v1361
        %v1363 = vmul.f32 %v948, %v1361
        %v1364 = vmul.f32 %v1064, %v1361
        %v1365 = vmul.f32 %v1342, %v1361
        %v1366 = vmul.f32 %v950, %v1361
        %v1367 = vmul.f32 %v1065, %v1361
        %v1368 = vmul.f32 %v1343, %v1361
        %v1369 = vmul.f32 %v952, %v1361
        %v1370 = vmul.f32 %v1066, %v1361
        %v1371 = vmul.f32 %v1344, %v1361
        %v1372 = vmul.f32 %v954, %v1361
        %v1373 = vmul.f32 %v1067, %v1361
        %v1374 = vmul.f32 %v1345, %v1361
        %v1375 = vmul.f32 %v956, %v1361
        %v1376 = vmul.f32 %v1068, %v1361
        %v1377 = vmul.f32 %v1346, %v1361
        %v1378 = vmul.f32 %v958, %v1361
        %v1379 = vmul.f32 %v1069, %v1361
        %v1380 = vmul.f32 %v1347, %v1361
        %v1381 = vmul.f32 %v960, %v1361
        %v1382 = vmul.f32 %v1070, %v1361
        %v1383 = vmul.f32 %v1348, %v1361
        %v1384 = vmul.f32 %v962, %v1361
        %v1385 = vmul.f32 %v1071, %v1361
        %v1386 = vmul.f32 %v1349, %v1361
        %v1387 = vmul.f32 %v964, %v1361
        %v1388 = vmul.f32 %v1072, %v1361
        %v1389 = vmul.f32 %v1350, %v1361
        %v1390 = vmul.f32 %v966, %v1361
        %v1391 = vmul.f32 %v1073, %v1361
        %v1392 = vmul.f32 %v1351, %v1361
        %v1393 = vmul.f32 %v968, %v1361
        %v1394 = vmul.f32 %v1074, %v1361
        %v1395 = vmul.f32 %v1352, %v1361
        %v1396 = vmul.f32 %v970, %v1361
        %v1397 = vmul.f32 %v1075, %v1361
        %v1398 = vmul.f32 %v1353, %v1361
        %v1399 = vmul.f32 %v972, %v1361
        %v1400 = vmul.f32 %v1076, %v1361
        %v1401 = vmul.f32 %v1354, %v1361
        %v1402 = vmul.f32 %v974, %v1361
        %v1403 = vmul.f32 %v1077, %v1361
        %v1404 = vmul.f32 %v1355, %v1361
        %v1405 = vmul.f32 %v976, %v1361
        %v1406 = vmul.f32 %v1078, %v1361
        %v1407 = vmul.f32 %v1356, %v1361
        %v1408 = vmul.f32 %v978, %v1361
        %v1409 = vmul.f32 %v1079, %v1361
        %v1458 = vrot.slane %v1362, 2
        %v1459 = vrot.slane %v1363, 2
        %v1460 = vsel %vm769, %v1458, %v1459
        %v1461 = vrot.slane %v1364, 2
        %v1462 = vsel %vm769, %v1459, %v1461
        %v1463 = vrot.slane %v1365, 2
        %v1464 = vrot.slane %v1366, 2
        %v1465 = vsel %vm769, %v1463, %v1464
        %v1466 = vrot.slane %v1367, 2
        %v1467 = vsel %vm769, %v1464, %v1466
        %v1468 = vrot.slane %v1368, 2
        %v1469 = vrot.slane %v1369, 2
        %v1470 = vsel %vm769, %v1468, %v1469
        %v1471 = vrot.slane %v1370, 2
        %v1472 = vsel %vm769, %v1469, %v1471
        %v1473 = vrot.slane %v1371, 2
        %v1474 = vrot.slane %v1372, 2
        %v1475 = vsel %vm769, %v1473, %v1474
        %v1476 = vrot.slane %v1373, 2
        %v1477 = vsel %vm769, %v1474, %v1476
        %v1478 = vrot.slane %v1374, 2
        %v1479 = vrot.slane %v1375, 2
        %v1480 = vsel %vm769, %v1478, %v1479
        %v1481 = vrot.slane %v1376, 2
        %v1482 = vsel %vm769, %v1479, %v1481
        %v1483 = vrot.slane %v1377, 2
        %v1484 = vrot.slane %v1378, 2
        %v1485 = vsel %vm769, %v1483, %v1484
        %v1486 = vrot.slane %v1379, 2
        %v1487 = vsel %vm769, %v1484, %v1486
        %v1488 = vrot.slane %v1380, 2
        %v1489 = vrot.slane %v1381, 2
        %v1490 = vsel %vm769, %v1488, %v1489
        %v1491 = vrot.slane %v1382, 2
        %v1492 = vsel %vm769, %v1489, %v1491
        %v1493 = vrot.slane %v1383, 2
        %v1494 = vrot.slane %v1384, 2
        %v1495 = vsel %vm769, %v1493, %v1494
        %v1496 = vrot.slane %v1385, 2
        %v1497 = vsel %vm769, %v1494, %v1496
        %v1498 = vrot.slane %v1386, 2
        %v1499 = vrot.slane %v1387, 2
        %v1500 = vsel %vm769, %v1498, %v1499
        %v1501 = vrot.slane %v1388, 2
        %v1502 = vsel %vm769, %v1499, %v1501
        %v1503 = vrot.slane %v1389, 2
        %v1504 = vrot.slane %v1390, 2
        %v1505 = vsel %vm769, %v1503, %v1504
        %v1506 = vrot.slane %v1391, 2
        %v1507 = vsel %vm769, %v1504, %v1506
        %v1508 = vrot.slane %v1392, 2
        %v1509 = vrot.slane %v1393, 2
        %v1510 = vsel %vm769, %v1508, %v1509
        %v1511 = vrot.slane %v1394, 2
        %v1512 = vsel %vm769, %v1509, %v1511
        %v1513 = vrot.slane %v1395, 2
        %v1514 = vrot.slane %v1396, 2
        %v1515 = vsel %vm769, %v1513, %v1514
        %v1516 = vrot.slane %v1397, 2
        %v1517 = vsel %vm769, %v1514, %v1516
        %v1518 = vrot.slane %v1398, 2
        %v1519 = vrot.slane %v1399, 2
        %v1520 = vsel %vm769, %v1518, %v1519
        %v1521 = vrot.slane %v1400, 2
        %v1522 = vsel %vm769, %v1519, %v1521
        %v1523 = vrot.slane %v1401, 2
        %v1524 = vrot.slane %v1402, 2
        %v1525 = vsel %vm769, %v1523, %v1524
        %v1526 = vrot.slane %v1403, 2
        %v1527 = vsel %vm769, %v1524, %v1526
        %v1528 = vrot.slane %v1404, 2
        %v1529 = vrot.slane %v1405, 2
        %v1530 = vsel %vm769, %v1528, %v1529
        %v1531 = vrot.slane %v1406, 2
        %v1532 = vsel %vm769, %v1529, %v1531
        %v1533 = vrot.slane %v1407, 2
        %v1534 = vrot.slane %v1408, 2
        %v1535 = vsel %vm769, %v1533, %v1534
        %v1536 = vrot.slane %v1409, 2
        %v1537 = vsel %vm769, %v1534, %v1536
        %v1570 = vadd.f32 %v1293, %v1460
        %v1571 = vadd.f32 %v1294, %v1462
        %v1572 = vadd.f32 %v1295, %v1465
        %v1573 = vadd.f32 %v1296, %v1467
        %v1574 = vadd.f32 %v1297, %v1470
        %v1575 = vadd.f32 %v1298, %v1472
        %v1576 = vadd.f32 %v1299, %v1475
        %v1577 = vadd.f32 %v1300, %v1477
        %v1578 = vadd.f32 %v1301, %v1480
        %v1579 = vadd.f32 %v1302, %v1482
        %v1580 = vadd.f32 %v1303, %v1485
        %v1581 = vadd.f32 %v1304, %v1487
        %v1582 = vadd.f32 %v1305, %v1490
        %v1583 = vadd.f32 %v1306, %v1492
        %v1584 = vadd.f32 %v1307, %v1495
        %v1585 = vadd.f32 %v1308, %v1497
        %v1586 = vadd.f32 %v1309, %v1500
        %v1587 = vadd.f32 %v1310, %v1502
        %v1588 = vadd.f32 %v1311, %v1505
        %v1589 = vadd.f32 %v1312, %v1507
        %v1590 = vadd.f32 %v1313, %v1510
        %v1591 = vadd.f32 %v1314, %v1512
        %v1592 = vadd.f32 %v1315, %v1515
        %v1593 = vadd.f32 %v1316, %v1517
        %v1594 = vadd.f32 %v1317, %v1520
        %v1595 = vadd.f32 %v1318, %v1522
        %v1596 = vadd.f32 %v1319, %v1525
        %v1597 = vadd.f32 %v1320, %v1527
        %v1598 = vadd.f32 %v1321, %v1530
        %v1599 = vadd.f32 %v1322, %v1532
        %v1600 = vadd.f32 %v1323, %v1535
        %v1601 = vadd.f32 %v1324, %v1537
        %s1602 = scalar_lea.vmem %s217, 24
        %v1603 = vld [vmem:[%s1602] sm:$0xf]
        %v1604 = vld [vmem:[%s1602 + $0x4] sm:$0xf]
        %v1605 = vld [vmem:[%s1602 + $0xc] sm:$0xf]
        %v1606 = vld [vmem:[%s1602 + $0x10] sm:$0xf]
        %v1607 = vld [vmem:[%s1602 + $0x18] sm:$0xf]
        %v1608 = vld [vmem:[%s1602 + $0x1c] sm:$0xf]
        %v1609 = vld [vmem:[%s1602 + $0x24] sm:$0xf]
        %v1610 = vld [vmem:[%s1602 + $0x28] sm:$0xf]
        %v1611 = vld [vmem:[%s1602 + $0x30] sm:$0xf]
        %v1612 = vld [vmem:[%s1602 + $0x34] sm:$0xf]
        %v1613 = vld [vmem:[%s1602 + $0x3c] sm:$0xf]
        %v1614 = vld [vmem:[%s1602 + $0x40] sm:$0xf]
        %v1615 = vld [vmem:[%s1602 + $0x48] sm:$0xf]
        %v1616 = vld [vmem:[%s1602 + $0x4c] sm:$0xf]
        %v1617 = vld [vmem:[%s1602 + $0x54] sm:$0xf]
        %v1618 = vld [vmem:[%s1602 + $0x58] sm:$0xf]
        %v1619 = vld [vmem:[%s1602 + $0x60] sm:$0xf]
        %v1620 = vld [vmem:[%s1602 + $0x64] sm:$0xf]
        %v1621 = vld [vmem:[%s1602 + $0x6c] sm:$0xf]
        %v1622 = vld [vmem:[%s1602 + $0x70] sm:$0xf]
        %v1623 = vld [vmem:[%s1602 + $0x78] sm:$0xf]
        %v1624 = vld [vmem:[%s1602 + $0x7c] sm:$0xf]
        %v1625 = vld [vmem:[%s1602 + $0x84] sm:$0xf]
        %v1626 = vld [vmem:[%s1602 + $0x88] sm:$0xf]
        %v1627 = vld [vmem:[%s1602 + $0x90] sm:$0xf]
        %v1628 = vld [vmem:[%s1602 + $0x94] sm:$0xf]
        %v1629 = vld [vmem:[%s1602 + $0x9c] sm:$0xf]
        %v1630 = vld [vmem:[%s1602 + $0xa0] sm:$0xf]
        %v1631 = vld [vmem:[%s1602 + $0xa8] sm:$0xf]
        %v1632 = vld [vmem:[%s1602 + $0xac] sm:$0xf]
        %v1633 = vld [vmem:[%s1602 + $0xb4] sm:$0xf]
        %v1634 = vld [vmem:[%s1602 + $0xb8] sm:$0xf]
        %v1635 = vunpack.c.l.bf16 %v1603
        %v1636 = vunpack.c.l.bf16 %v1604
        %v1637 = vunpack.c.l.bf16 %v1605
        %v1638 = vunpack.c.l.bf16 %v1606
        %v1639 = vunpack.c.l.bf16 %v1607
        %v1640 = vunpack.c.l.bf16 %v1608
        %v1641 = vunpack.c.l.bf16 %v1609
        %v1642 = vunpack.c.l.bf16 %v1610
        %v1643 = vunpack.c.l.bf16 %v1611
        %v1644 = vunpack.c.l.bf16 %v1612
        %v1645 = vunpack.c.l.bf16 %v1613
        %v1646 = vunpack.c.l.bf16 %v1614
        %v1647 = vunpack.c.l.bf16 %v1615
        %v1648 = vunpack.c.l.bf16 %v1616
        %v1649 = vunpack.c.l.bf16 %v1617
        %v1650 = vunpack.c.l.bf16 %v1618
        %v1651 = vunpack.c.l.bf16 %v1619
        %v1652 = vunpack.c.l.bf16 %v1620
        %v1653 = vunpack.c.l.bf16 %v1621
        %v1654 = vunpack.c.l.bf16 %v1622
        %v1655 = vunpack.c.l.bf16 %v1623
        %v1656 = vunpack.c.l.bf16 %v1624
        %v1657 = vunpack.c.l.bf16 %v1625
        %v1658 = vunpack.c.l.bf16 %v1626
        %v1659 = vunpack.c.l.bf16 %v1627
        %v1660 = vunpack.c.l.bf16 %v1628
        %v1661 = vunpack.c.l.bf16 %v1629
        %v1662 = vunpack.c.l.bf16 %v1630
        %v1663 = vunpack.c.l.bf16 %v1631
        %v1664 = vunpack.c.l.bf16 %v1632
        %v1665 = vunpack.c.l.bf16 %v1633
        %v1666 = vunpack.c.l.bf16 %v1634
        %v1667 = vld [vmem:[%s221 + $0x6] sm:$0x1]
        %v1668 = vlaneseq
        %v1669 = vshrl.u32 %v1668, 7
        %v1670 = vsub.s32 0, %v1669
        %v1671 = vrot.slane %v1667, %v1670
        %v1672 = vmul.f32 %v1635, %v1671
        %v1673 = vmul.f32 %v1636, %v1671
        %v1674 = vmul.f32 %v1637, %v1671
        %v1675 = vmul.f32 %v1638, %v1671
        %v1676 = vmul.f32 %v1639, %v1671
        %v1677 = vmul.f32 %v1640, %v1671
        %v1678 = vmul.f32 %v1641, %v1671
        %v1679 = vmul.f32 %v1642, %v1671
        %v1680 = vmul.f32 %v1643, %v1671
        %v1681 = vmul.f32 %v1644, %v1671
        %v1682 = vmul.f32 %v1645, %v1671
        %v1683 = vmul.f32 %v1646, %v1671
        %v1684 = vmul.f32 %v1647, %v1671
        %v1685 = vmul.f32 %v1648, %v1671
        %v1686 = vmul.f32 %v1649, %v1671
        %v1687 = vmul.f32 %v1650, %v1671
        %v1688 = vmul.f32 %v1651, %v1671
        %v1689 = vmul.f32 %v1652, %v1671
        %v1690 = vmul.f32 %v1653, %v1671
        %v1691 = vmul.f32 %v1654, %v1671
        %v1692 = vmul.f32 %v1655, %v1671
        %v1693 = vmul.f32 %v1656, %v1671
        %v1694 = vmul.f32 %v1657, %v1671
        %v1695 = vmul.f32 %v1658, %v1671
        %v1696 = vmul.f32 %v1659, %v1671
        %v1697 = vmul.f32 %v1660, %v1671
        %v1698 = vmul.f32 %v1661, %v1671
        %v1699 = vmul.f32 %v1662, %v1671
        %v1700 = vmul.f32 %v1663, %v1671
        %v1701 = vmul.f32 %v1664, %v1671
        %v1702 = vmul.f32 %v1665, %v1671
        %v1703 = vmul.f32 %v1666, %v1671
        %v1704 = vadd.f32 %v1570, %v1672
        %v1705 = vadd.f32 %v1571, %v1673
        %v1706 = vadd.f32 %v1572, %v1674
        %v1707 = vadd.f32 %v1573, %v1675
        %v1708 = vadd.f32 %v1574, %v1676
        %v1709 = vadd.f32 %v1575, %v1677
        %v1710 = vadd.f32 %v1576, %v1678
        %v1711 = vadd.f32 %v1577, %v1679
        %v1712 = vadd.f32 %v1578, %v1680
        %v1713 = vadd.f32 %v1579, %v1681
        %v1714 = vadd.f32 %v1580, %v1682
        %v1715 = vadd.f32 %v1581, %v1683
        %v1716 = vadd.f32 %v1582, %v1684
        %v1717 = vadd.f32 %v1583, %v1685
        %v1718 = vadd.f32 %v1584, %v1686
        %v1719 = vadd.f32 %v1585, %v1687
        %v1720 = vadd.f32 %v1586, %v1688
        %v1721 = vadd.f32 %v1587, %v1689
        %v1722 = vadd.f32 %v1588, %v1690
        %v1723 = vadd.f32 %v1589, %v1691
        %v1724 = vadd.f32 %v1590, %v1692
        %v1725 = vadd.f32 %v1591, %v1693
        %v1726 = vadd.f32 %v1592, %v1694
        %v1727 = vadd.f32 %v1593, %v1695
        %v1728 = vadd.f32 %v1594, %v1696
        %v1729 = vadd.f32 %v1595, %v1697
        %v1730 = vadd.f32 %v1596, %v1698
        %v1731 = vadd.f32 %v1597, %v1699
        %v1732 = vadd.f32 %v1598, %v1700
        %v1733 = vadd.f32 %v1599, %v1701
        %v1734 = vadd.f32 %v1600, %v1702
        %v1735 = vadd.f32 %v1601, %v1703
        %v1736 = vld [vmem:[%s1602 + $0x8] sm:$0x1]
        %v1737 = vld [vmem:[%s1602 + $0x14] sm:$0x1]
        %v1738 = vld [vmem:[%s1602 + $0x20] sm:$0x1]
        %v1739 = vld [vmem:[%s1602 + $0x2c] sm:$0x1]
        %v1740 = vld [vmem:[%s1602 + $0x38] sm:$0x1]
        %v1741 = vld [vmem:[%s1602 + $0x44] sm:$0x1]
        %v1742 = vld [vmem:[%s1602 + $0x50] sm:$0x1]
        %v1743 = vld [vmem:[%s1602 + $0x5c] sm:$0x1]
        %v1744 = vld [vmem:[%s1602 + $0x68] sm:$0x1]
        %v1745 = vld [vmem:[%s1602 + $0x74] sm:$0x1]
        %v1746 = vld [vmem:[%s1602 + $0x80] sm:$0x1]
        %v1747 = vld [vmem:[%s1602 + $0x8c] sm:$0x1]
        %v1748 = vld [vmem:[%s1602 + $0x98] sm:$0x1]
        %v1749 = vld [vmem:[%s1602 + $0xa4] sm:$0x1]
        %v1750 = vld [vmem:[%s1602 + $0xb0] sm:$0x1]
        %v1751 = vld [vmem:[%s1602 + $0xbc] sm:$0x1]
        %v1752 = vunpack.c.l.bf16 %v1736
        %v1753 = vunpack.c.l.bf16 %v1737
        %v1754 = vunpack.c.l.bf16 %v1738
        %v1755 = vunpack.c.l.bf16 %v1739
        %v1756 = vunpack.c.l.bf16 %v1740
        %v1757 = vunpack.c.l.bf16 %v1741
        %v1758 = vunpack.c.l.bf16 %v1742
        %v1759 = vunpack.c.l.bf16 %v1743
        %v1760 = vunpack.c.l.bf16 %v1744
        %v1761 = vunpack.c.l.bf16 %v1745
        %v1762 = vunpack.c.l.bf16 %v1746
        %v1763 = vunpack.c.l.bf16 %v1747
        %v1764 = vunpack.c.l.bf16 %v1748
        %v1765 = vunpack.c.l.bf16 %v1749
        %v1766 = vunpack.c.l.bf16 %v1750
        %v1767 = vunpack.c.l.bf16 %v1751
        %v1768 = vld [vmem:[%s221 + $0x7] sm:$0x1]
        %v1769 = vlaneseq
        %v1770 = vshrl.u32 %v1769, 7
        %v1771 = vsub.s32 0, %v1770
        %v1772 = vrot.slane %v1768, %v1771
        %v1773 = vmul.f32 %v1635, %v1772
        %v1774 = vmul.f32 %v1636, %v1772
        %v1775 = vmul.f32 %v1752, %v1772
        %v1776 = vmul.f32 %v1637, %v1772
        %v1777 = vmul.f32 %v1638, %v1772
        %v1778 = vmul.f32 %v1753, %v1772
        %v1779 = vmul.f32 %v1639, %v1772
        %v1780 = vmul.f32 %v1640, %v1772
        %v1781 = vmul.f32 %v1754, %v1772
        %v1782 = vmul.f32 %v1641, %v1772
        %v1783 = vmul.f32 %v1642, %v1772
        %v1784 = vmul.f32 %v1755, %v1772
        %v1785 = vmul.f32 %v1643, %v1772
        %v1786 = vmul.f32 %v1644, %v1772
        %v1787 = vmul.f32 %v1756, %v1772
        %v1788 = vmul.f32 %v1645, %v1772
        %v1789 = vmul.f32 %v1646, %v1772
        %v1790 = vmul.f32 %v1757, %v1772
        %v1791 = vmul.f32 %v1647, %v1772
        %v1792 = vmul.f32 %v1648, %v1772
        %v1793 = vmul.f32 %v1758, %v1772
        %v1794 = vmul.f32 %v1649, %v1772
        %v1795 = vmul.f32 %v1650, %v1772
        %v1796 = vmul.f32 %v1759, %v1772
        %v1797 = vmul.f32 %v1651, %v1772
        %v1798 = vmul.f32 %v1652, %v1772
        %v1799 = vmul.f32 %v1760, %v1772
        %v1800 = vmul.f32 %v1653, %v1772
        %v1801 = vmul.f32 %v1654, %v1772
        %v1802 = vmul.f32 %v1761, %v1772
        %v1803 = vmul.f32 %v1655, %v1772
        %v1804 = vmul.f32 %v1656, %v1772
        %v1805 = vmul.f32 %v1762, %v1772
        %v1806 = vmul.f32 %v1657, %v1772
        %v1807 = vmul.f32 %v1658, %v1772
        %v1808 = vmul.f32 %v1763, %v1772
        %v1809 = vmul.f32 %v1659, %v1772
        %v1810 = vmul.f32 %v1660, %v1772
        %v1811 = vmul.f32 %v1764, %v1772
        %v1812 = vmul.f32 %v1661, %v1772
        %v1813 = vmul.f32 %v1662, %v1772
        %v1814 = vmul.f32 %v1765, %v1772
        %v1815 = vmul.f32 %v1663, %v1772
        %v1816 = vmul.f32 %v1664, %v1772
        %v1817 = vmul.f32 %v1766, %v1772
        %v1818 = vmul.f32 %v1665, %v1772
        %v1819 = vmul.f32 %v1666, %v1772
        %v1820 = vmul.f32 %v1767, %v1772
        %v1869 = vrot.slane %v1773, 1
        %v1870 = vrot.slane %v1774, 1
        %v1871 = vsel %vm491, %v1869, %v1870
        %v1872 = vrot.slane %v1775, 1
        %v1873 = vsel %vm491, %v1870, %v1872
        %v1874 = vrot.slane %v1776, 1
        %v1875 = vrot.slane %v1777, 1
        %v1876 = vsel %vm491, %v1874, %v1875
        %v1877 = vrot.slane %v1778, 1
        %v1878 = vsel %vm491, %v1875, %v1877
        %v1879 = vrot.slane %v1779, 1
        %v1880 = vrot.slane %v1780, 1
        %v1881 = vsel %vm491, %v1879, %v1880
        %v1882 = vrot.slane %v1781, 1
        %v1883 = vsel %vm491, %v1880, %v1882
        %v1884 = vrot.slane %v1782, 1
        %v1885 = vrot.slane %v1783, 1
        %v1886 = vsel %vm491, %v1884, %v1885
        %v1887 = vrot.slane %v1784, 1
        %v1888 = vsel %vm491, %v1885, %v1887
        %v1889 = vrot.slane %v1785, 1
        %v1890 = vrot.slane %v1786, 1
        %v1891 = vsel %vm491, %v1889, %v1890
        %v1892 = vrot.slane %v1787, 1
        %v1893 = vsel %vm491, %v1890, %v1892
        %v1894 = vrot.slane %v1788, 1
        %v1895 = vrot.slane %v1789, 1
        %v1896 = vsel %vm491, %v1894, %v1895
        %v1897 = vrot.slane %v1790, 1
        %v1898 = vsel %vm491, %v1895, %v1897
        %v1899 = vrot.slane %v1791, 1
        %v1900 = vrot.slane %v1792, 1
        %v1901 = vsel %vm491, %v1899, %v1900
        %v1902 = vrot.slane %v1793, 1
        %v1903 = vsel %vm491, %v1900, %v1902
        %v1904 = vrot.slane %v1794, 1
        %v1905 = vrot.slane %v1795, 1
        %v1906 = vsel %vm491, %v1904, %v1905
        %v1907 = vrot.slane %v1796, 1
        %v1908 = vsel %vm491, %v1905, %v1907
        %v1909 = vrot.slane %v1797, 1
        %v1910 = vrot.slane %v1798, 1
        %v1911 = vsel %vm491, %v1909, %v1910
        %v1912 = vrot.slane %v1799, 1
        %v1913 = vsel %vm491, %v1910, %v1912
        %v1914 = vrot.slane %v1800, 1
        %v1915 = vrot.slane %v1801, 1
        %v1916 = vsel %vm491, %v1914, %v1915
        %v1917 = vrot.slane %v1802, 1
        %v1918 = vsel %vm491, %v1915, %v1917
        %v1919 = vrot.slane %v1803, 1
        %v1920 = vrot.slane %v1804, 1
        %v1921 = vsel %vm491, %v1919, %v1920
        %v1922 = vrot.slane %v1805, 1
        %v1923 = vsel %vm491, %v1920, %v1922
        %v1924 = vrot.slane %v1806, 1
        %v1925 = vrot.slane %v1807, 1
        %v1926 = vsel %vm491, %v1924, %v1925
        %v1927 = vrot.slane %v1808, 1
        %v1928 = vsel %vm491, %v1925, %v1927
        %v1929 = vrot.slane %v1809, 1
        %v1930 = vrot.slane %v1810, 1
        %v1931 = vsel %vm491, %v1929, %v1930
        %v1932 = vrot.slane %v1811, 1
        %v1933 = vsel %vm491, %v1930, %v1932
        %v1934 = vrot.slane %v1812, 1
        %v1935 = vrot.slane %v1813, 1
        %v1936 = vsel %vm491, %v1934, %v1935
        %v1937 = vrot.slane %v1814, 1
        %v1938 = vsel %vm491, %v1935, %v1937
        %v1939 = vrot.slane %v1815, 1
        %v1940 = vrot.slane %v1816, 1
        %v1941 = vsel %vm491, %v1939, %v1940
        %v1942 = vrot.slane %v1817, 1
        %v1943 = vsel %vm491, %v1940, %v1942
        %v1944 = vrot.slane %v1818, 1
        %v1945 = vrot.slane %v1819, 1
        %v1946 = vsel %vm491, %v1944, %v1945
        %v1947 = vrot.slane %v1820, 1
        %v1948 = vsel %vm491, %v1945, %v1947
        %v1981 = vadd.f32 %v1704, %v1871
        %v1982 = vadd.f32 %v1705, %v1873
        %v1983 = vadd.f32 %v1706, %v1876
        %v1984 = vadd.f32 %v1707, %v1878
        %v1985 = vadd.f32 %v1708, %v1881
        %v1986 = vadd.f32 %v1709, %v1883
        %v1987 = vadd.f32 %v1710, %v1886
        %v1988 = vadd.f32 %v1711, %v1888
        %v1989 = vadd.f32 %v1712, %v1891
        %v1990 = vadd.f32 %v1713, %v1893
        %v1991 = vadd.f32 %v1714, %v1896
        %v1992 = vadd.f32 %v1715, %v1898
        %v1993 = vadd.f32 %v1716, %v1901
        %v1994 = vadd.f32 %v1717, %v1903
        %v1995 = vadd.f32 %v1718, %v1906
        %v1996 = vadd.f32 %v1719, %v1908
        %v1997 = vadd.f32 %v1720, %v1911
        %v1998 = vadd.f32 %v1721, %v1913
        %v1999 = vadd.f32 %v1722, %v1916
        %v2000 = vadd.f32 %v1723, %v1918
        %v2001 = vadd.f32 %v1724, %v1921
        %v2002 = vadd.f32 %v1725, %v1923
        %v2003 = vadd.f32 %v1726, %v1926
        %v2004 = vadd.f32 %v1727, %v1928
        %v2005 = vadd.f32 %v1728, %v1931
        %v2006 = vadd.f32 %v1729, %v1933
        %v2007 = vadd.f32 %v1730, %v1936
        %v2008 = vadd.f32 %v1731, %v1938
        %v2009 = vadd.f32 %v1732, %v1941
        %v2010 = vadd.f32 %v1733, %v1943
        %v2011 = vadd.f32 %v1734, %v1946
        %v2012 = vadd.f32 %v1735, %v1948
        %v2013 = vld [vmem:[%s1602] sm:$0xe]
        %v2014 = vld [vmem:[%s1602 + $0xc] sm:$0xe]
        %v2015 = vld [vmem:[%s1602 + $0x18] sm:$0xe]
        %v2016 = vld [vmem:[%s1602 + $0x24] sm:$0xe]
        %v2017 = vld [vmem:[%s1602 + $0x30] sm:$0xe]
        %v2018 = vld [vmem:[%s1602 + $0x3c] sm:$0xe]
        %v2019 = vld [vmem:[%s1602 + $0x48] sm:$0xe]
        %v2020 = vld [vmem:[%s1602 + $0x54] sm:$0xe]
        %v2021 = vld [vmem:[%s1602 + $0x60] sm:$0xe]
        %v2022 = vld [vmem:[%s1602 + $0x6c] sm:$0xe]
        %v2023 = vld [vmem:[%s1602 + $0x78] sm:$0xe]
        %v2024 = vld [vmem:[%s1602 + $0x84] sm:$0xe]
        %v2025 = vld [vmem:[%s1602 + $0x90] sm:$0xe]
        %v2026 = vld [vmem:[%s1602 + $0x9c] sm:$0xe]
        %v2027 = vld [vmem:[%s1602 + $0xa8] sm:$0xe]
        %v2028 = vld [vmem:[%s1602 + $0xb4] sm:$0xe]
        %v2029 = vunpack.c.l.bf16 %v2013
        %v2030 = vunpack.c.l.bf16 %v2014
        %v2031 = vunpack.c.l.bf16 %v2015
        %v2032 = vunpack.c.l.bf16 %v2016
        %v2033 = vunpack.c.l.bf16 %v2017
        %v2034 = vunpack.c.l.bf16 %v2018
        %v2035 = vunpack.c.l.bf16 %v2019
        %v2036 = vunpack.c.l.bf16 %v2020
        %v2037 = vunpack.c.l.bf16 %v2021
        %v2038 = vunpack.c.l.bf16 %v2022
        %v2039 = vunpack.c.l.bf16 %v2023
        %v2040 = vunpack.c.l.bf16 %v2024
        %v2041 = vunpack.c.l.bf16 %v2025
        %v2042 = vunpack.c.l.bf16 %v2026
        %v2043 = vunpack.c.l.bf16 %v2027
        %v2044 = vunpack.c.l.bf16 %v2028
        %v2045 = vld [vmem:[%s221 + $0x8] sm:$0x1]
        %v2046 = vlaneseq
        %v2047 = vshrl.u32 %v2046, 7
        %v2048 = vsub.s32 0, %v2047
        %v2049 = vrot.slane %v2045, %v2048
        %v2050 = vmul.f32 %v2029, %v2049
        %v2051 = vmul.f32 %v1636, %v2049
        %v2052 = vmul.f32 %v1752, %v2049
        %v2053 = vmul.f32 %v2030, %v2049
        %v2054 = vmul.f32 %v1638, %v2049
        %v2055 = vmul.f32 %v1753, %v2049
        %v2056 = vmul.f32 %v2031, %v2049
        %v2057 = vmul.f32 %v1640, %v2049
        %v2058 = vmul.f32 %v1754, %v2049
        %v2059 = vmul.f32 %v2032, %v2049
        %v2060 = vmul.f32 %v1642, %v2049
        %v2061 = vmul.f32 %v1755, %v2049
        %v2062 = vmul.f32 %v2033, %v2049
        %v2063 = vmul.f32 %v1644, %v2049
        %v2064 = vmul.f32 %v1756, %v2049
        %v2065 = vmul.f32 %v2034, %v2049
        %v2066 = vmul.f32 %v1646, %v2049
        %v2067 = vmul.f32 %v1757, %v2049
        %v2068 = vmul.f32 %v2035, %v2049
        %v2069 = vmul.f32 %v1648, %v2049
        %v2070 = vmul.f32 %v1758, %v2049
        %v2071 = vmul.f32 %v2036, %v2049
        %v2072 = vmul.f32 %v1650, %v2049
        %v2073 = vmul.f32 %v1759, %v2049
        %v2074 = vmul.f32 %v2037, %v2049
        %v2075 = vmul.f32 %v1652, %v2049
        %v2076 = vmul.f32 %v1760, %v2049
        %v2077 = vmul.f32 %v2038, %v2049
        %v2078 = vmul.f32 %v1654, %v2049
        %v2079 = vmul.f32 %v1761, %v2049
        %v2080 = vmul.f32 %v2039, %v2049
        %v2081 = vmul.f32 %v1656, %v2049
        %v2082 = vmul.f32 %v1762, %v2049
        %v2083 = vmul.f32 %v2040, %v2049
        %v2084 = vmul.f32 %v1658, %v2049
        %v2085 = vmul.f32 %v1763, %v2049
        %v2086 = vmul.f32 %v2041, %v2049
        %v2087 = vmul.f32 %v1660, %v2049
        %v2088 = vmul.f32 %v1764, %v2049
        %v2089 = vmul.f32 %v2042, %v2049
        %v2090 = vmul.f32 %v1662, %v2049
        %v2091 = vmul.f32 %v1765, %v2049
        %v2092 = vmul.f32 %v2043, %v2049
        %v2093 = vmul.f32 %v1664, %v2049
        %v2094 = vmul.f32 %v1766, %v2049
        %v2095 = vmul.f32 %v2044, %v2049
        %v2096 = vmul.f32 %v1666, %v2049
        %v2097 = vmul.f32 %v1767, %v2049
        %v2146 = vrot.slane %v2050, 2
        %v2147 = vrot.slane %v2051, 2
        %v2148 = vsel %vm769, %v2146, %v2147
        %v2149 = vrot.slane %v2052, 2
        %v2150 = vsel %vm769, %v2147, %v2149
        %v2151 = vrot.slane %v2053, 2
        %v2152 = vrot.slane %v2054, 2
        %v2153 = vsel %vm769, %v2151, %v2152
        %v2154 = vrot.slane %v2055, 2
        %v2155 = vsel %vm769, %v2152, %v2154
        %v2156 = vrot.slane %v2056, 2
        %v2157 = vrot.slane %v2057, 2
        %v2158 = vsel %vm769, %v2156, %v2157
        %v2159 = vrot.slane %v2058, 2
        %v2160 = vsel %vm769, %v2157, %v2159
        %v2161 = vrot.slane %v2059, 2
        %v2162 = vrot.slane %v2060, 2
        %v2163 = vsel %vm769, %v2161, %v2162
        %v2164 = vrot.slane %v2061, 2
        %v2165 = vsel %vm769, %v2162, %v2164
        %v2166 = vrot.slane %v2062, 2
        %v2167 = vrot.slane %v2063, 2
        %v2168 = vsel %vm769, %v2166, %v2167
        %v2169 = vrot.slane %v2064, 2
        %v2170 = vsel %vm769, %v2167, %v2169
        %v2171 = vrot.slane %v2065, 2
        %v2172 = vrot.slane %v2066, 2
        %v2173 = vsel %vm769, %v2171, %v2172
        %v2174 = vrot.slane %v2067, 2
        %v2175 = vsel %vm769, %v2172, %v2174
        %v2176 = vrot.slane %v2068, 2
        %v2177 = vrot.slane %v2069, 2
        %v2178 = vsel %vm769, %v2176, %v2177
        %v2179 = vrot.slane %v2070, 2
        %v2180 = vsel %vm769, %v2177, %v2179
        %v2181 = vrot.slane %v2071, 2
        %v2182 = vrot.slane %v2072, 2
        %v2183 = vsel %vm769, %v2181, %v2182
        %v2184 = vrot.slane %v2073, 2
        %v2185 = vsel %vm769, %v2182, %v2184
        %v2186 = vrot.slane %v2074, 2
        %v2187 = vrot.slane %v2075, 2
        %v2188 = vsel %vm769, %v2186, %v2187
        %v2189 = vrot.slane %v2076, 2
        %v2190 = vsel %vm769, %v2187, %v2189
        %v2191 = vrot.slane %v2077, 2
        %v2192 = vrot.slane %v2078, 2
        %v2193 = vsel %vm769, %v2191, %v2192
        %v2194 = vrot.slane %v2079, 2
        %v2195 = vsel %vm769, %v2192, %v2194
        %v2196 = vrot.slane %v2080, 2
        %v2197 = vrot.slane %v2081, 2
        %v2198 = vsel %vm769, %v2196, %v2197
        %v2199 = vrot.slane %v2082, 2
        %v2200 = vsel %vm769, %v2197, %v2199
        %v2201 = vrot.slane %v2083, 2
        %v2202 = vrot.slane %v2084, 2
        %v2203 = vsel %vm769, %v2201, %v2202
        %v2204 = vrot.slane %v2085, 2
        %v2205 = vsel %vm769, %v2202, %v2204
        %v2206 = vrot.slane %v2086, 2
        %v2207 = vrot.slane %v2087, 2
        %v2208 = vsel %vm769, %v2206, %v2207
        %v2209 = vrot.slane %v2088, 2
        %v2210 = vsel %vm769, %v2207, %v2209
        %v2211 = vrot.slane %v2089, 2
        %v2212 = vrot.slane %v2090, 2
        %v2213 = vsel %vm769, %v2211, %v2212
        %v2214 = vrot.slane %v2091, 2
        %v2215 = vsel %vm769, %v2212, %v2214
        %v2216 = vrot.slane %v2092, 2
        %v2217 = vrot.slane %v2093, 2
        %v2218 = vsel %vm769, %v2216, %v2217
        %v2219 = vrot.slane %v2094, 2
        %v2220 = vsel %vm769, %v2217, %v2219
        %v2221 = vrot.slane %v2095, 2
        %v2222 = vrot.slane %v2096, 2
        %v2223 = vsel %vm769, %v2221, %v2222
        %v2224 = vrot.slane %v2097, 2
        %v2225 = vsel %vm769, %v2222, %v2224
        %v2258 = vadd.f32 %v1981, %v2148
        %v2259 = vadd.f32 %v1982, %v2150
        %v2260 = vadd.f32 %v1983, %v2153
        %v2261 = vadd.f32 %v1984, %v2155
        %v2262 = vadd.f32 %v1985, %v2158
        %v2263 = vadd.f32 %v1986, %v2160
        %v2264 = vadd.f32 %v1987, %v2163
        %v2265 = vadd.f32 %v1988, %v2165
        %v2266 = vadd.f32 %v1989, %v2168
        %v2267 = vadd.f32 %v1990, %v2170
        %v2268 = vadd.f32 %v1991, %v2173
        %v2269 = vadd.f32 %v1992, %v2175
        %v2270 = vadd.f32 %v1993, %v2178
        %v2271 = vadd.f32 %v1994, %v2180
        %v2272 = vadd.f32 %v1995, %v2183
        %v2273 = vadd.f32 %v1996, %v2185
        %v2274 = vadd.f32 %v1997, %v2188
        %v2275 = vadd.f32 %v1998, %v2190
        %v2276 = vadd.f32 %v1999, %v2193
        %v2277 = vadd.f32 %v2000, %v2195
        %v2278 = vadd.f32 %v2001, %v2198
        %v2279 = vadd.f32 %v2002, %v2200
        %v2280 = vadd.f32 %v2003, %v2203
        %v2281 = vadd.f32 %v2004, %v2205
        %v2282 = vadd.f32 %v2005, %v2208
        %v2283 = vadd.f32 %v2006, %v2210
        %v2284 = vadd.f32 %v2007, %v2213
        %v2285 = vadd.f32 %v2008, %v2215
        %v2286 = vadd.f32 %v2009, %v2218
        %v2287 = vadd.f32 %v2010, %v2220
        %v2288 = vadd.f32 %v2011, %v2223
        %v2289 = vadd.f32 %v2012, %v2225
        %v2290 = vld [vmem:[%s224] sm:$0x1]
        %v2292 = vlaneseq
        %v2293 = vshrl.u32 %v2292, 7
        %v2294 = vsub.s32 0, %v2293
        %v2295 = vrot.slane %v2290, %v2294
        %v2297 = vadd.f32 %v2258, %v2295
        %v2298 = vadd.f32 %v2259, %v2295
        %v2299 = vadd.f32 %v2260, %v2295
        %v2300 = vadd.f32 %v2261, %v2295
        %v2301 = vadd.f32 %v2262, %v2295
        %v2302 = vadd.f32 %v2263, %v2295
        %v2303 = vadd.f32 %v2264, %v2295
        %v2304 = vadd.f32 %v2265, %v2295
        %v2305 = vadd.f32 %v2266, %v2295
        %v2306 = vadd.f32 %v2267, %v2295
        %v2307 = vadd.f32 %v2268, %v2295
        %v2308 = vadd.f32 %v2269, %v2295
        %v2309 = vadd.f32 %v2270, %v2295
        %v2310 = vadd.f32 %v2271, %v2295
        %v2311 = vadd.f32 %v2272, %v2295
        %v2312 = vadd.f32 %v2273, %v2295
        %v2313 = vadd.f32 %v2274, %v2295
        %v2314 = vadd.f32 %v2275, %v2295
        %v2315 = vadd.f32 %v2276, %v2295
        %v2316 = vadd.f32 %v2277, %v2295
        %v2317 = vadd.f32 %v2278, %v2295
        %v2318 = vadd.f32 %v2279, %v2295
        %v2319 = vadd.f32 %v2280, %v2295
        %v2320 = vadd.f32 %v2281, %v2295
        %v2321 = vadd.f32 %v2282, %v2295
        %v2322 = vadd.f32 %v2283, %v2295
        %v2323 = vadd.f32 %v2284, %v2295
        %v2324 = vadd.f32 %v2285, %v2295
        %v2325 = vadd.f32 %v2286, %v2295
        %v2326 = vadd.f32 %v2287, %v2295
        %v2327 = vadd.f32 %v2288, %v2295
        %v2328 = vadd.f32 %v2289, %v2295
        %v2329 = vmul.f32 %v2297, 0.5
        %v2330 = vmul.f32 %v2298, 0.5
        %v2331 = vmul.f32 %v2299, 0.5
        %v2332 = vmul.f32 %v2300, 0.5
        %v2333 = vmul.f32 %v2301, 0.5
        %v2334 = vmul.f32 %v2302, 0.5
        %v2335 = vmul.f32 %v2303, 0.5
        %v2336 = vmul.f32 %v2304, 0.5
        %v2337 = vmul.f32 %v2305, 0.5
        %v2338 = vmul.f32 %v2306, 0.5
        %v2339 = vmul.f32 %v2307, 0.5
        %v2340 = vmul.f32 %v2308, 0.5
        %v2341 = vmul.f32 %v2309, 0.5
        %v2342 = vmul.f32 %v2310, 0.5
        %v2343 = vmul.f32 %v2311, 0.5
        %v2344 = vmul.f32 %v2312, 0.5
        %v2345 = vmul.f32 %v2313, 0.5
        %v2346 = vmul.f32 %v2314, 0.5
        %v2347 = vmul.f32 %v2315, 0.5
        %v2348 = vmul.f32 %v2316, 0.5
        %v2349 = vmul.f32 %v2317, 0.5
        %v2350 = vmul.f32 %v2318, 0.5
        %v2351 = vmul.f32 %v2319, 0.5
        %v2352 = vmul.f32 %v2320, 0.5
        %v2353 = vmul.f32 %v2321, 0.5
        %v2354 = vmul.f32 %v2322, 0.5
        %v2355 = vmul.f32 %v2323, 0.5
        %v2356 = vmul.f32 %v2324, 0.5
        %v2357 = vmul.f32 %v2325, 0.5
        %v2358 = vmul.f32 %v2326, 0.5
        %v2359 = vmul.f32 %v2327, 0.5
        %v2360 = vmul.f32 %v2328, 0.5
        %v2361 = vtanh.pop %v2329
        %v2362 = vtanh.pop %v2330
        %v2363 = vtanh.pop %v2331
        %v2364 = vtanh.pop %v2332
        %v2365 = vtanh.pop %v2333
        %v2366 = vtanh.pop %v2334
        %v2367 = vtanh.pop %v2335
        %v2368 = vtanh.pop %v2336
        %v2369 = vtanh.pop %v2337
        %v2370 = vtanh.pop %v2338
        %v2371 = vtanh.pop %v2339
        %v2372 = vtanh.pop %v2340
        %v2373 = vtanh.pop %v2341
        %v2374 = vtanh.pop %v2342
        %v2375 = vtanh.pop %v2343
        %v2376 = vtanh.pop %v2344
        %v2377 = vtanh.pop %v2345
        %v2378 = vtanh.pop %v2346
        %v2379 = vtanh.pop %v2347
        %v2380 = vtanh.pop %v2348
        %v2381 = vtanh.pop %v2349
        %v2382 = vtanh.pop %v2350
        %v2383 = vtanh.pop %v2351
        %v2384 = vtanh.pop %v2352
        %v2385 = vtanh.pop %v2353
        %v2386 = vtanh.pop %v2354
        %v2387 = vtanh.pop %v2355
        %v2388 = vtanh.pop %v2356
        %v2389 = vtanh.pop %v2357
        %v2390 = vtanh.pop %v2358
        %v2391 = vtanh.pop %v2359
        %v2392 = vtanh.pop %v2360
        %v2393 = vmul.f32 %v2361, 0.5
        %v2394 = vmul.f32 %v2362, 0.5
        %v2395 = vmul.f32 %v2363, 0.5
        %v2396 = vmul.f32 %v2364, 0.5
        %v2397 = vmul.f32 %v2365, 0.5
        %v2398 = vmul.f32 %v2366, 0.5
        %v2399 = vmul.f32 %v2367, 0.5
        %v2400 = vmul.f32 %v2368, 0.5
        %v2401 = vmul.f32 %v2369, 0.5
        %v2402 = vmul.f32 %v2370, 0.5
        %v2403 = vmul.f32 %v2371, 0.5
        %v2404 = vmul.f32 %v2372, 0.5
        %v2405 = vmul.f32 %v2373, 0.5
        %v2406 = vmul.f32 %v2374, 0.5
        %v2407 = vmul.f32 %v2375, 0.5
        %v2408 = vmul.f32 %v2376, 0.5
        %v2409 = vmul.f32 %v2377, 0.5
        %v2410 = vmul.f32 %v2378, 0.5
        %v2411 = vmul.f32 %v2379, 0.5
        %v2412 = vmul.f32 %v2380, 0.5
        %v2413 = vmul.f32 %v2381, 0.5
        %v2414 = vmul.f32 %v2382, 0.5
        %v2415 = vmul.f32 %v2383, 0.5
        %v2416 = vmul.f32 %v2384, 0.5
        %v2417 = vmul.f32 %v2385, 0.5
        %v2418 = vmul.f32 %v2386, 0.5
        %v2419 = vmul.f32 %v2387, 0.5
        %v2420 = vmul.f32 %v2388, 0.5
        %v2421 = vmul.f32 %v2389, 0.5
        %v2422 = vmul.f32 %v2390, 0.5
        %v2423 = vmul.f32 %v2391, 0.5
        %v2424 = vmul.f32 %v2392, 0.5
        %v2425 = vadd.f32 %v2393, 0.5
        %v2426 = vadd.f32 %v2394, 0.5
        %v2427 = vadd.f32 %v2395, 0.5
        %v2428 = vadd.f32 %v2396, 0.5
        %v2429 = vadd.f32 %v2397, 0.5
        %v2430 = vadd.f32 %v2398, 0.5
        %v2431 = vadd.f32 %v2399, 0.5
        %v2432 = vadd.f32 %v2400, 0.5
        %v2433 = vadd.f32 %v2401, 0.5
        %v2434 = vadd.f32 %v2402, 0.5
        %v2435 = vadd.f32 %v2403, 0.5
        %v2436 = vadd.f32 %v2404, 0.5
        %v2437 = vadd.f32 %v2405, 0.5
        %v2438 = vadd.f32 %v2406, 0.5
        %v2439 = vadd.f32 %v2407, 0.5
        %v2440 = vadd.f32 %v2408, 0.5
        %v2441 = vadd.f32 %v2409, 0.5
        %v2442 = vadd.f32 %v2410, 0.5
        %v2443 = vadd.f32 %v2411, 0.5
        %v2444 = vadd.f32 %v2412, 0.5
        %v2445 = vadd.f32 %v2413, 0.5
        %v2446 = vadd.f32 %v2414, 0.5
        %v2447 = vadd.f32 %v2415, 0.5
        %v2448 = vadd.f32 %v2416, 0.5
        %v2449 = vadd.f32 %v2417, 0.5
        %v2450 = vadd.f32 %v2418, 0.5
        %v2451 = vadd.f32 %v2419, 0.5
        %v2452 = vadd.f32 %v2420, 0.5
        %v2453 = vadd.f32 %v2421, 0.5
        %v2454 = vadd.f32 %v2422, 0.5
        %v2455 = vadd.f32 %v2423, 0.5
        %v2456 = vadd.f32 %v2424, 0.5
        %v2457 = vmul.f32 %v2297, %v2425
        %v2458 = vmul.f32 %v2298, %v2426
        %v2459 = vmul.f32 %v2299, %v2427
        %v2460 = vmul.f32 %v2300, %v2428
        %v2461 = vmul.f32 %v2301, %v2429
        %v2462 = vmul.f32 %v2302, %v2430
        %v2463 = vmul.f32 %v2303, %v2431
        %v2464 = vmul.f32 %v2304, %v2432
        %v2465 = vmul.f32 %v2305, %v2433
        %v2466 = vmul.f32 %v2306, %v2434
        %v2467 = vmul.f32 %v2307, %v2435
        %v2468 = vmul.f32 %v2308, %v2436
        %v2469 = vmul.f32 %v2309, %v2437
        %v2470 = vmul.f32 %v2310, %v2438
        %v2471 = vmul.f32 %v2311, %v2439
        %v2472 = vmul.f32 %v2312, %v2440
        %v2473 = vmul.f32 %v2313, %v2441
        %v2474 = vmul.f32 %v2314, %v2442
        %v2475 = vmul.f32 %v2315, %v2443
        %v2476 = vmul.f32 %v2316, %v2444
        %v2477 = vmul.f32 %v2317, %v2445
        %v2478 = vmul.f32 %v2318, %v2446
        %v2479 = vmul.f32 %v2319, %v2447
        %v2480 = vmul.f32 %v2320, %v2448
        %v2481 = vmul.f32 %v2321, %v2449
        %v2482 = vmul.f32 %v2322, %v2450
        %v2483 = vmul.f32 %v2323, %v2451
        %v2484 = vmul.f32 %v2324, %v2452
        %v2485 = vmul.f32 %v2325, %v2453
        %v2486 = vmul.f32 %v2326, %v2454
        %v2487 = vmul.f32 %v2327, %v2455
        %v2488 = vmul.f32 %v2328, %v2456
        %v2489 = vpack.c.bf16 %v2458, %v2457
        %v2490 = vpack.c.bf16 %v2460, %v2459
        %v2491 = vpack.c.bf16 %v2462, %v2461
        %v2492 = vpack.c.bf16 %v2464, %v2463
        %v2493 = vpack.c.bf16 %v2466, %v2465
        %v2494 = vpack.c.bf16 %v2468, %v2467
        %v2495 = vpack.c.bf16 %v2470, %v2469
        %v2496 = vpack.c.bf16 %v2472, %v2471
        %v2497 = vpack.c.bf16 %v2474, %v2473
        %v2498 = vpack.c.bf16 %v2476, %v2475
        %v2499 = vpack.c.bf16 %v2478, %v2477
        %v2500 = vpack.c.bf16 %v2480, %v2479
        %v2501 = vpack.c.bf16 %v2482, %v2481
        %v2502 = vpack.c.bf16 %v2484, %v2483
        %v2503 = vpack.c.bf16 %v2486, %v2485
        %v2504 = vpack.c.bf16 %v2488, %v2487
        %v2521 = vunpack.c.l.b16 %v2489
        %v2522 = vunpack.c.h.b16 %v2489
        %v2523 = vunpack.c.l.b16 %v2490
        %v2524 = vunpack.c.h.b16 %v2490
        %v2525 = vunpack.c.l.b16 %v2491
        %v2526 = vunpack.c.h.b16 %v2491
        %v2527 = vunpack.c.l.b16 %v2492
        %v2528 = vunpack.c.h.b16 %v2492
        %v2529 = vunpack.c.l.b16 %v2493
        %v2530 = vunpack.c.h.b16 %v2493
        %v2531 = vunpack.c.l.b16 %v2494
        %v2532 = vunpack.c.h.b16 %v2494
        %v2533 = vunpack.c.l.b16 %v2495
        %v2534 = vunpack.c.h.b16 %v2495
        %v2535 = vunpack.c.l.b16 %v2496
        %v2536 = vunpack.c.h.b16 %v2496
        %v2537 = vunpack.c.l.b16 %v2497
        %v2538 = vunpack.c.h.b16 %v2497
        %v2539 = vunpack.c.l.b16 %v2498
        %v2540 = vunpack.c.h.b16 %v2498
        %v2541 = vunpack.c.l.b16 %v2499
        %v2542 = vunpack.c.h.b16 %v2499
        %v2543 = vunpack.c.l.b16 %v2500
        %v2544 = vunpack.c.h.b16 %v2500
        %v2545 = vunpack.c.l.b16 %v2501
        %v2546 = vunpack.c.h.b16 %v2501
        %v2547 = vunpack.c.l.b16 %v2502
        %v2548 = vunpack.c.h.b16 %v2502
        %v2549 = vunpack.c.l.b16 %v2503
        %v2550 = vunpack.c.h.b16 %v2503
        %v2551 = vunpack.c.l.b16 %v2504
        %v2552 = vunpack.c.h.b16 %v2504
        %v2553 = vpack.c.b16 %v2521, %v2521
        %v2554 = vpack.c.b16 %v2522, %v2522
        %v2555 = vpack.c.b16 %v2523, %v2523
        %v2556 = vpack.c.b16 %v2524, %v2524
        %v2557 = vpack.c.b16 %v2525, %v2525
        %v2558 = vpack.c.b16 %v2526, %v2526
        %v2559 = vpack.c.b16 %v2527, %v2527
        %v2560 = vpack.c.b16 %v2528, %v2528
        %v2561 = vpack.c.b16 %v2529, %v2529
        %v2562 = vpack.c.b16 %v2530, %v2530
        %v2563 = vpack.c.b16 %v2531, %v2531
        %v2564 = vpack.c.b16 %v2532, %v2532
        %v2565 = vpack.c.b16 %v2533, %v2533
        %v2566 = vpack.c.b16 %v2534, %v2534
        %v2567 = vpack.c.b16 %v2535, %v2535
        %v2568 = vpack.c.b16 %v2536, %v2536
        %v2569 = vpack.c.b16 %v2537, %v2537
        %v2570 = vpack.c.b16 %v2538, %v2538
        %v2571 = vpack.c.b16 %v2539, %v2539
        %v2572 = vpack.c.b16 %v2540, %v2540
        %v2573 = vpack.c.b16 %v2541, %v2541
        %v2574 = vpack.c.b16 %v2542, %v2542
        %v2575 = vpack.c.b16 %v2543, %v2543
        %v2576 = vpack.c.b16 %v2544, %v2544
        %v2577 = vpack.c.b16 %v2545, %v2545
        %v2578 = vpack.c.b16 %v2546, %v2546
        %v2579 = vpack.c.b16 %v2547, %v2547
        %v2580 = vpack.c.b16 %v2548, %v2548
        %v2581 = vpack.c.b16 %v2549, %v2549
        %v2582 = vpack.c.b16 %v2550, %v2550
        %v2583 = vpack.c.b16 %v2551, %v2551
        %v2584 = vpack.c.b16 %v2552, %v2552
        %2617 = vst [vmem:[%s209] sm:$0xf] %v2553
        %2618 = vst [vmem:[%s209 + $0x4] sm:$0xf] %v2554
        %2619 = vst [vmem:[%s209 + $0x8] sm:$0xf] %v2555
        %2620 = vst [vmem:[%s209 + $0xc] sm:$0xf] %v2556
        %2621 = vst [vmem:[%s209 + $0x10] sm:$0xf] %v2557
        %2622 = vst [vmem:[%s209 + $0x14] sm:$0xf] %v2558
        %2623 = vst [vmem:[%s209 + $0x18] sm:$0xf] %v2559
        %2624 = vst [vmem:[%s209 + $0x1c] sm:$0xf] %v2560
        %2625 = vst [vmem:[%s209 + $0x20] sm:$0xf] %v2561
        %2626 = vst [vmem:[%s209 + $0x24] sm:$0xf] %v2562
        %2627 = vst [vmem:[%s209 + $0x28] sm:$0xf] %v2563
        %2628 = vst [vmem:[%s209 + $0x2c] sm:$0xf] %v2564
        %2629 = vst [vmem:[%s209 + $0x30] sm:$0xf] %v2565
        %2630 = vst [vmem:[%s209 + $0x34] sm:$0xf] %v2566
        %2631 = vst [vmem:[%s209 + $0x38] sm:$0xf] %v2567
        %2632 = vst [vmem:[%s209 + $0x3c] sm:$0xf] %v2568
        %2633 = vst [vmem:[%s209 + $0x40] sm:$0xf] %v2569
        %2634 = vst [vmem:[%s209 + $0x44] sm:$0xf] %v2570
        %2635 = vst [vmem:[%s209 + $0x48] sm:$0xf] %v2571
        %2636 = vst [vmem:[%s209 + $0x4c] sm:$0xf] %v2572
        %2637 = vst [vmem:[%s209 + $0x50] sm:$0xf] %v2573
        %2638 = vst [vmem:[%s209 + $0x54] sm:$0xf] %v2574
        %2639 = vst [vmem:[%s209 + $0x58] sm:$0xf] %v2575
        %2640 = vst [vmem:[%s209 + $0x5c] sm:$0xf] %v2576
        %2641 = vst [vmem:[%s209 + $0x60] sm:$0xf] %v2577
        %2642 = vst [vmem:[%s209 + $0x64] sm:$0xf] %v2578
        %2643 = vst [vmem:[%s209 + $0x68] sm:$0xf] %v2579
        %2644 = vst [vmem:[%s209 + $0x6c] sm:$0xf] %v2580
        %2645 = vst [vmem:[%s209 + $0x70] sm:$0xf] %v2581
        %2646 = vst [vmem:[%s209 + $0x74] sm:$0xf] %v2582
        %2647 = vst [vmem:[%s209 + $0x78] sm:$0xf] %v2583
        %2648 = vst [vmem:[%s209 + $0x7c] sm:$0xf] %v2584
        %s2649 = sand.u32 %s119, 1
        %s2650 = scalar_lea.sflag [#allocation3], %s2649
        %s2651 = sand.u32 %s119, 1
        %s2652 = smul.addr %s2651, 128
        %s2653 = scalar_lea.vmem [#allocation2], %s2652
        // Predicated region
        $region33: #{tpu_custom_call.1} parent=31 // pred_check
          %p2654 = pneg %p129
        $region34: #{tpu_custom_call.1} parent=31 // pred_check_branch
          %2656 = sbr.rel (%p2654) target = $region36
        $region35: #{tpu_custom_call.1} parent=31 // pred_region
          %s2658 = ssub.s32 2048, 2048
          %2659 = vsyncadd %s2650, %s2658
          %s2660 = smul.addr %s21, 32
          %s2661 = sadd.s32 %s22, %s2660
          %s2662 = smul.addr %s2661, 64
          %s2663 = scalar_lea.hbm %s3, %s2662
          %s2664 = sshll.u32 %s2653, 4
          %s2665 = int_to_ptr.vmem [resolvable:$true] %s2664
          %2670 = dma.vmem_to_hbm [thread:$0]  %s2665, 2048, %s2663, %s2650, 64, 64, 4
        $region36: #{tpu_custom_call.1} parent=31 // pred_fallthru
          _
      $region32: #{tpu_custom_call.1} parent=5 // pred_fallthru
        _
      %p2671 = scmp.le.s32.totalorder 2, %s12
      // Predicated region
      $region37: #{tpu_custom_call.1} parent=5 // pred_check
        %p2672 = pneg %p2671
      $region38: #{tpu_custom_call.1} parent=5 // pred_check_branch
        %2674 = sbr.rel (%p2672) target = $region40
      $region39: #{tpu_custom_call.1} parent=5 // pred_region
        %s2675 = ssub.s32 %s12, 2
        // Predicated region
        $region41: #{tpu_custom_call.1} parent=39 // pred_check
          %p2676 = pneg %p135
        $region42: #{tpu_custom_call.1} parent=39 // pred_check_branch
          %2678 = sbr.rel (%p2676) target = $region44
        $region43: #{tpu_custom_call.1} parent=39 // pred_region
          %s2679 = sand.u32 %s120, 1
          %s2680 = scalar_lea.sflag [#allocation3], %s2679
          %s2681 = sand.u32 %s120, 1
          %s2682 = smul.addr %s2681, 128
          %s2683 = scalar_lea.vmem [#allocation2], %s2682
          %2684 = dma.done %s2680, 2048
        $region44: #{tpu_custom_call.1} parent=39 // pred_fallthru
          _
      $region40: #{tpu_custom_call.1} parent=5 // pred_fallthru
        _
    $region6: #{tpu_custom_call.1} parent=1 // loop_footer
      %s16 = sadd.s32 1, %s12
    $region7: #{tpu_custom_call.1} parent=1 // loop_footer_branch
      %11 = sbr.rel target = $region3
    $region8: #{tpu_custom_call.1} parent=1 // loop_exit
      _
    %2685 = vsyncpa [#allocation3], 1
    %s2686 = scalar_lea.sflag [#allocation3], 1
    %2687 = vsyncpa %s2686, 1

</llo_original>
